<compile_context>
chip_gen: v7x
topology: tpu7x:2x2x1
jax: 0.10.0
libtpu: 0.0.40
codegen_flags: <defaults>
</compile_context>

<pallas_src>
import functools

import jax
import jax.numpy as jnp
from jax import lax
from jax.experimental import pallas as pl
from jax.experimental.pallas import tpu as pltpu

NEG_INF = -1e30
LANE = 128


def _round_up(x, m):
    return (x + m - 1) // m * m


def _gat_layer(h_in, w_ref, al_ref, b_ref, mask, fo, *, apply_relu):
    """One GATConv (num_heads=1) on VMEM-resident, lane-padded values."""
    # h_aug = x @ [W | W@attn_r^T | 0]; bf16 operands, f32 MXU accumulation.
    h_aug = jnp.dot(h_in.astype(jnp.bfloat16), w_ref[...],
                    preferred_element_type=jnp.float32)            # (Np, Fp)
    h_bf = h_aug.astype(jnp.bfloat16)                              # cast once

    # Source term lands lane-major directly: (1,Fp) x (Np,Fp) -> (1,Np) (MXU).
    el_row = lax.dot_general(al_ref[...], h_bf, (((1,), (1,)), ((), ())),
                             preferred_element_type=jnp.float32)   # (1, Np)
    # Destination term was folded into the fc matmul as column `fo` of W_aug.
    er = h_aug[:, fo:fo + 1]                                       # (Np, 1)

    # e[v,u] = el[u] + er[v]; LeakyReLU(0.2) == max(e, 0.2*e); mask -> -inf.
    e = el_row + er                                                # (Np, Np)
    e = jnp.maximum(e, 0.2 * e)
    e = jnp.where(mask, e, NEG_INF)

    # Masked softmax per dst row. Masked entries underflow to exactly 0 after
    # exp (real rows are non-empty thanks to self-loops): no second select.
    e_max = jnp.max(e, axis=-1, keepdims=True)
    p = jnp.exp(e - e_max)
    denom = jnp.sum(p, axis=-1, keepdims=True)
    inv = pl.reciprocal(jnp.maximum(denom, 1e-30), approx=True)    # EUP slot
    alpha = (p * inv).astype(jnp.bfloat16)                         # (Np, Np)

    # Aggregate messages on the MXU. Columns >= fo are junk/zero; they are
    # killed by the next layer's zero-padded W_aug rows or sliced in wrapper.
    out = jnp.dot(alpha, h_bf, preferred_element_type=jnp.float32) + b_ref[...]
    if apply_relu:
        out = jnp.maximum(out, 0.0)
    return out


def _gat3_kernel(x_ref, adj_ref,
                 w1_ref, al1_ref, b1_ref,
                 w2_ref, al2_ref, b2_ref,
                 w3_ref, al3_ref, b3_ref,
                 o_ref, *, fo1, fo2, fo3):
    mask = adj_ref[...] != 0                                       # reused 3x

    h = _gat_layer(x_ref[...], w1_ref, al1_ref, b1_ref, mask, fo1,
                   apply_relu=True)
    h = _gat_layer(h, w2_ref, al2_ref, b2_ref, mask, fo2, apply_relu=True)
    h = _gat_layer(h, w3_ref, al3_ref, b3_ref, mask, fo3, apply_relu=False)

    o_ref[...] = h                                                 # lane-dense


def _prep_layer(w, al, ar, b, f_pad):
    """Pad + augment one GATConv's params: W_aug = [W | W@attn_r^T | 0]."""
    fi, fo = w.shape
    w_aug = jnp.zeros((f_pad, f_pad), jnp.float32)
    w_aug = w_aug.at[:fi, :fo].set(w)
    w_aug = w_aug.at[:fi, fo].set(w @ ar[0])                # folded er column
    al_pad = jnp.zeros((1, f_pad), jnp.float32).at[:, :fo].set(al)
    b_pad = jnp.zeros((1, f_pad), jnp.float32).at[:, :fo].set(b)
    return w_aug.astype(jnp.bfloat16), al_pad.astype(jnp.bfloat16), b_pad, fo


def gat_forward(params, adj, in_feat):
    """Fused 3-layer GAT forward. Returns (N, 1, out_feats) like DGL GATConv."""
    N, fin = in_feat.shape
    out_feats = params[2][0].shape[1]
    n_pad = _round_up(N, LANE)      # src axis lane-dense; dst axis mult. of 8
    f_pad = LANE                    # all feature dims fit one lane tile

    assert fin <= f_pad
    assert all(w.shape[0] <= f_pad and w.shape[1] + 1 <= f_pad
               for (w, _, _, _) in params)

    # Self-loops are load-bearing: a dst row with no incoming edge would get a
    # spurious uniform alpha (1/N) instead of zero output.
    try:
        diag_ok = bool((jnp.diagonal(adj) != 0).all())
    except jax.errors.TracerBoolConversionError:
        diag_ok = True
    assert diag_ok, "adjacency must contain self-loops"

    # Lane-pad node features (bf16) and adjacency (int8, 4x smaller DMA).
    x_pad = jnp.zeros((n_pad, f_pad), jnp.bfloat16).at[:N, :fin].set(
        in_feat.astype(jnp.bfloat16))
    adj_i8 = jnp.zeros((n_pad, n_pad), jnp.int8).at[:N, :N].set(
        (adj != 0).astype(jnp.int8))

    flat_args = [x_pad, adj_i8]
    in_specs = [
        pl.BlockSpec((n_pad, f_pad), lambda i: (0, 0)),   # x
        pl.BlockSpec((n_pad, n_pad), lambda i: (0, 0)),   # adjacency (dst,src)
    ]
    fos = []
    for (w, al, ar, b) in params:
        w_aug, al_pad, b_pad, fo = _prep_layer(w, al, ar, b, f_pad)
        flat_args += [w_aug, al_pad, b_pad]
        in_specs += [
            pl.BlockSpec((f_pad, f_pad), lambda i: (0, 0)),   # W_aug (bf16)
            pl.BlockSpec((1, f_pad), lambda i: (0, 0)),       # attn_l (bf16)
            pl.BlockSpec((1, f_pad), lambda i: (0, 0)),       # bias (f32)
        ]
        fos.append(fo)

    kernel = functools.partial(_gat3_kernel, fo1=fos[0], fo2=fos[1], fo3=fos[2])
    out = pl.pallas_call(
        kernel,
        out_shape=jax.ShapeDtypeStruct((n_pad, f_pad), jnp.float32),
        grid=(1,),
        in_specs=in_specs,
        out_specs=pl.BlockSpec((n_pad, f_pad), lambda i: (0, 0)),
        # Footprint is well under 1 MiB: do NOT request the full 64 MiB
        # (that is v7x's entire physical VMEM per TensorCore).
        compiler_params=pltpu.CompilerParams(
            dimension_semantics=("arbitrary",)),
    )(*flat_args)
    # DGL GATConv returns (N, num_heads, out_feats); num_heads == 1 kept.
    return out[:N, :out_feats][:, None, :]


def init_gat_params(key, in_feats, hid_feats, out_feats):
    """Deterministic xavier-normal-ish init for the 3 GATConv layers."""
    dims = [(in_feats, hid_feats), (hid_feats, hid_feats), (hid_feats, out_feats)]
    params = []
    for (fi, fo) in dims:
        key, k_w, k_l, k_r = jax.random.split(key, 4)
        gain = jnp.sqrt(2.0)
        w = gain * jax.random.normal(k_w, (fi, fo), jnp.float32) * jnp.sqrt(2.0 / (fi + fo))
        al = gain * jax.random.normal(k_l, (1, fo), jnp.float32) * jnp.sqrt(2.0 / (1 + fo))
        ar = gain * jax.random.normal(k_r, (1, fo), jnp.float32) * jnp.sqrt(2.0 / (1 + fo))
        b = jnp.zeros((1, fo), jnp.float32)
        params.append((w, al, ar, b))
    return params


if __name__ == "__main__":
    N = 64            # number of graph nodes
    in_feats = 16
    hid_feats = 32
    out_feats = 8

    key = jax.random.PRNGKey(0)
    k_feat, k_adj, k_param = jax.random.split(key, 3)

    # node features
    in_feat = jax.random.normal(k_feat, (N, in_feats), jnp.float32)

    # random directed graph + self-loops, dense mask adj[dst, src]
    adj = jax.random.bernoulli(k_adj, 0.2, (N, N)).astype(jnp.float32)
    adj = jnp.maximum(adj, jnp.eye(N, dtype=jnp.float32))

    params = init_gat_params(k_param, in_feats, hid_feats, out_feats)

    out = gat_forward(params, adj, in_feat)
    jax.block_until_ready(out)
    assert out.shape == (N, 1, out_feats)
    print("KERNEL_OK")
</pallas_src>

<mosaic_0001>
module attributes {stable_mosaic.version = 11 : i64} {
  func.func @_gat3_kernel(%arg0: i32, %arg1: memref<128x128xbf16, #tpu.memory_space<vmem>>, %arg2: memref<128x128xi8, #tpu.memory_space<vmem>>, %arg3: memref<128x128xbf16, #tpu.memory_space<vmem>>, %arg4: memref<1x128xbf16, #tpu.memory_space<vmem>>, %arg5: memref<1x128xf32, #tpu.memory_space<vmem>>, %arg6: memref<128x128xbf16, #tpu.memory_space<vmem>>, %arg7: memref<1x128xbf16, #tpu.memory_space<vmem>>, %arg8: memref<1x128xf32, #tpu.memory_space<vmem>>, %arg9: memref<128x128xbf16, #tpu.memory_space<vmem>>, %arg10: memref<1x128xbf16, #tpu.memory_space<vmem>>, %arg11: memref<1x128xf32, #tpu.memory_space<vmem>>, %arg12: memref<128x128xf32, #tpu.memory_space<vmem>>) attributes {dimension_semantics = [#tpu.dimension_semantics<arbitrary>], iteration_bounds = array<i64: 1>, scalar_prefetch = 0 : i64, scratch_operands = 0 : i64, tpu.core_type = #tpu.core_type<tc>, window_params = [{pipeline_mode = #tpu.pipeline_mode<synchronous>, transform_indices = @transform_0, window_bounds = array<i64: 128, 128>}, {pipeline_mode = #tpu.pipeline_mode<synchronous>, transform_indices = @transform_1, window_bounds = array<i64: 128, 128>}, {pipeline_mode = #tpu.pipeline_mode<synchronous>, transform_indices = @transform_2, window_bounds = array<i64: 128, 128>}, {pipeline_mode = #tpu.pipeline_mode<synchronous>, transform_indices = @transform_3, window_bounds = array<i64: 1, 128>}, {pipeline_mode = #tpu.pipeline_mode<synchronous>, transform_indices = @transform_4, window_bounds = array<i64: 1, 128>}, {pipeline_mode = #tpu.pipeline_mode<synchronous>, transform_indices = @transform_5, window_bounds = array<i64: 128, 128>}, {pipeline_mode = #tpu.pipeline_mode<synchronous>, transform_indices = @transform_6, window_bounds = array<i64: 1, 128>}, {pipeline_mode = #tpu.pipeline_mode<synchronous>, transform_indices = @transform_7, window_bounds = array<i64: 1, 128>}, {pipeline_mode = #tpu.pipeline_mode<synchronous>, transform_indices = @transform_8, window_bounds = array<i64: 128, 128>}, {pipeline_mode = #tpu.pipeline_mode<synchronous>, transform_indices = @transform_9, window_bounds = array<i64: 1, 128>}, {pipeline_mode = #tpu.pipeline_mode<synchronous>, transform_indices = @transform_10, window_bounds = array<i64: 1, 128>}, {pipeline_mode = #tpu.pipeline_mode<synchronous>, transform_indices = @transform_11, window_bounds = array<i64: 128, 128>}]} {
    %c0 = arith.constant 0 : index
    %c0_0 = arith.constant 0 : index
    %0 = vector.load %arg2[%c0, %c0_0] : memref<128x128xi8, #tpu.memory_space<vmem>>, vector<128x128xi8>
    %c0_i8 = arith.constant 0 : i8
    %1 = vector.broadcast %c0_i8 : i8 to vector<128x128xi8>
    %2 = arith.cmpi ne, %0, %1 : vector<128x128xi8>
    %c0_1 = arith.constant 0 : index
    %c0_2 = arith.constant 0 : index
    %3 = vector.load %arg1[%c0_1, %c0_2] : memref<128x128xbf16, #tpu.memory_space<vmem>>, vector<128x128xbf16>
    %c0_3 = arith.constant 0 : index
    %c0_4 = arith.constant 0 : index
    %4 = vector.load %arg3[%c0_3, %c0_4] : memref<128x128xbf16, #tpu.memory_space<vmem>>, vector<128x128xbf16>
    %cst = arith.constant dense<0.000000e+00> : vector<128x128xf32>
    %5 = tpu.matmul %3, %4, %cst {dimension_numbers = #tpu.dot_dimension_numbers<[1], [0], [0], [1], [0, 0, 1, 1], [], []>} : vector<128x128xbf16>, vector<128x128xbf16>, vector<128x128xf32> -> vector<128x128xf32>
    %6 = arith.truncf %5 : vector<128x128xf32> to vector<128x128xbf16>
    %c0_5 = arith.constant 0 : index
    %c0_6 = arith.constant 0 : index
    %7 = vector.load %arg4[%c0_5, %c0_6] : memref<1x128xbf16, #tpu.memory_space<vmem>>, vector<1x128xbf16>
    %cst_7 = arith.constant dense<0.000000e+00> : vector<1x128xf32>
    %8 = tpu.matmul %7, %6, %cst_7 {dimension_numbers = #tpu.dot_dimension_numbers<[1], [1], [0], [0], [0, 0, 1, 0], [], []>} : vector<1x128xbf16>, vector<128x128xbf16>, vector<1x128xf32> -> vector<1x128xf32>
    %9 = vector.extract_strided_slice %5 {offsets = [0, 32], sizes = [128, 1], strides = [1, 1]} : vector<128x128xf32> to vector<128x1xf32>
    %10 = vector.broadcast %8 : vector<1x128xf32> to vector<128x128xf32>
    %11 = vector.broadcast %9 : vector<128x1xf32> to vector<128x128xf32>
    %12 = arith.addf %10, %11 : vector<128x128xf32>
    %cst_8 = arith.constant 2.000000e-01 : f32
    %13 = vector.broadcast %cst_8 : f32 to vector<128x128xf32>
    %14 = arith.mulf %13, %12 : vector<128x128xf32>
    %15 = arith.maximumf %12, %14 : vector<128x128xf32>
    %cst_9 = arith.constant -1.000000e+30 : f32
    %16 = vector.broadcast %cst_9 : f32 to vector<128x128xf32>
    %17 = arith.select %2, %15, %16 : vector<128x128xi1>, vector<128x128xf32>
    %cst_10 = arith.constant dense<0xFF800000> : vector<128xf32>
    %18 = vector.multi_reduction <maximumf>, %17, %cst_10 [1] : vector<128x128xf32> to vector<128xf32>
    %19 = vector.shape_cast %18 : vector<128xf32> to vector<128x1xf32>
    %20 = vector.broadcast %19 : vector<128x1xf32> to vector<128x128xf32>
    %21 = arith.subf %17, %20 : vector<128x128xf32>
    %22 = math.exp %21 : vector<128x128xf32>
    %cst_11 = arith.constant dense<0.000000e+00> : vector<128xf32>
    %23 = vector.multi_reduction <add>, %22, %cst_11 [1] : vector<128x128xf32> to vector<128xf32>
    %24 = vector.shape_cast %23 : vector<128xf32> to vector<128x1xf32>
    %cst_12 = arith.constant 1.000000e-30 : f32
    %25 = vector.broadcast %cst_12 : f32 to vector<128x1xf32>
    %26 = arith.maximumf %24, %25 : vector<128x1xf32>
    %27 = tpu.reciprocal %26 {approx = true} : vector<128x1xf32> -> vector<128x1xf32>
    %28 = vector.broadcast %27 : vector<128x1xf32> to vector<128x128xf32>
    %29 = arith.mulf %22, %28 : vector<128x128xf32>
    %30 = arith.truncf %29 : vector<128x128xf32> to vector<128x128xbf16>
    %cst_13 = arith.constant dense<0.000000e+00> : vector<128x128xf32>
    %31 = tpu.matmul %30, %6, %cst_13 {dimension_numbers = #tpu.dot_dimension_numbers<[1], [0], [0], [1], [0, 0, 1, 1], [], []>} : vector<128x128xbf16>, vector<128x128xbf16>, vector<128x128xf32> -> vector<128x128xf32>
    %c0_14 = arith.constant 0 : index
    %c0_15 = arith.constant 0 : index
    %32 = vector.load %arg5[%c0_14, %c0_15] : memref<1x128xf32, #tpu.memory_space<vmem>>, vector<1x128xf32>
    %33 = vector.broadcast %32 : vector<1x128xf32> to vector<128x128xf32>
    %34 = arith.addf %31, %33 : vector<128x128xf32>
    %cst_16 = arith.constant 0.000000e+00 : f32
    %35 = vector.broadcast %cst_16 : f32 to vector<128x128xf32>
    %36 = arith.maximumf %34, %35 : vector<128x128xf32>
    %37 = arith.truncf %36 : vector<128x128xf32> to vector<128x128xbf16>
    %c0_17 = arith.constant 0 : index
    %c0_18 = arith.constant 0 : index
    %38 = vector.load %arg6[%c0_17, %c0_18] : memref<128x128xbf16, #tpu.memory_space<vmem>>, vector<128x128xbf16>
    %cst_19 = arith.constant dense<0.000000e+00> : vector<128x128xf32>
    %39 = tpu.matmul %37, %38, %cst_19 {dimension_numbers = #tpu.dot_dimension_numbers<[1], [0], [0], [1], [0, 0, 1, 1], [], []>} : vector<128x128xbf16>, vector<128x128xbf16>, vector<128x128xf32> -> vector<128x128xf32>
    %40 = arith.truncf %39 : vector<128x128xf32> to vector<128x128xbf16>
    %c0_20 = arith.constant 0 : index
    %c0_21 = arith.constant 0 : index
    %41 = vector.load %arg7[%c0_20, %c0_21] : memref<1x128xbf16, #tpu.memory_space<vmem>>, vector<1x128xbf16>
    %cst_22 = arith.constant dense<0.000000e+00> : vector<1x128xf32>
    %42 = tpu.matmul %41, %40, %cst_22 {dimension_numbers = #tpu.dot_dimension_numbers<[1], [1], [0], [0], [0, 0, 1, 0], [], []>} : vector<1x128xbf16>, vector<128x128xbf16>, vector<1x128xf32> -> vector<1x128xf32>
    %43 = vector.extract_strided_slice %39 {offsets = [0, 32], sizes = [128, 1], strides = [1, 1]} : vector<128x128xf32> to vector<128x1xf32>
    %44 = vector.broadcast %42 : vector<1x128xf32> to vector<128x128xf32>
    %45 = vector.broadcast %43 : vector<128x1xf32> to vector<128x128xf32>
    %46 = arith.addf %44, %45 : vector<128x128xf32>
    %cst_23 = arith.constant 2.000000e-01 : f32
    %47 = vector.broadcast %cst_23 : f32 to vector<128x128xf32>
    %48 = arith.mulf %47, %46 : vector<128x128xf32>
    %49 = arith.maximumf %46, %48 : vector<128x128xf32>
    %cst_24 = arith.constant -1.000000e+30 : f32
    %50 = vector.broadcast %cst_24 : f32 to vector<128x128xf32>
    %51 = arith.select %2, %49, %50 : vector<128x128xi1>, vector<128x128xf32>
    %cst_25 = arith.constant dense<0xFF800000> : vector<128xf32>
    %52 = vector.multi_reduction <maximumf>, %51, %cst_25 [1] : vector<128x128xf32> to vector<128xf32>
    %53 = vector.shape_cast %52 : vector<128xf32> to vector<128x1xf32>
    %54 = vector.broadcast %53 : vector<128x1xf32> to vector<128x128xf32>
    %55 = arith.subf %51, %54 : vector<128x128xf32>
    %56 = math.exp %55 : vector<128x128xf32>
    %cst_26 = arith.constant dense<0.000000e+00> : vector<128xf32>
    %57 = vector.multi_reduction <add>, %56, %cst_26 [1] : vector<128x128xf32> to vector<128xf32>
    %58 = vector.shape_cast %57 : vector<128xf32> to vector<128x1xf32>
    %cst_27 = arith.constant 1.000000e-30 : f32
    %59 = vector.broadcast %cst_27 : f32 to vector<128x1xf32>
    %60 = arith.maximumf %58, %59 : vector<128x1xf32>
    %61 = tpu.reciprocal %60 {approx = true} : vector<128x1xf32> -> vector<128x1xf32>
    %62 = vector.broadcast %61 : vector<128x1xf32> to vector<128x128xf32>
    %63 = arith.mulf %56, %62 : vector<128x128xf32>
    %64 = arith.truncf %63 : vector<128x128xf32> to vector<128x128xbf16>
    %cst_28 = arith.constant dense<0.000000e+00> : vector<128x128xf32>
    %65 = tpu.matmul %64, %40, %cst_28 {dimension_numbers = #tpu.dot_dimension_numbers<[1], [0], [0], [1], [0, 0, 1, 1], [], []>} : vector<128x128xbf16>, vector<128x128xbf16>, vector<128x128xf32> -> vector<128x128xf32>
    %c0_29 = arith.constant 0 : index
    %c0_30 = arith.constant 0 : index
    %66 = vector.load %arg8[%c0_29, %c0_30] : memref<1x128xf32, #tpu.memory_space<vmem>>, vector<1x128xf32>
    %67 = vector.broadcast %66 : vector<1x128xf32> to vector<128x128xf32>
    %68 = arith.addf %65, %67 : vector<128x128xf32>
    %cst_31 = arith.constant 0.000000e+00 : f32
    %69 = vector.broadcast %cst_31 : f32 to vector<128x128xf32>
    %70 = arith.maximumf %68, %69 : vector<128x128xf32>
    %71 = arith.truncf %70 : vector<128x128xf32> to vector<128x128xbf16>
    %c0_32 = arith.constant 0 : index
    %c0_33 = arith.constant 0 : index
    %72 = vector.load %arg9[%c0_32, %c0_33] : memref<128x128xbf16, #tpu.memory_space<vmem>>, vector<128x128xbf16>
    %cst_34 = arith.constant dense<0.000000e+00> : vector<128x128xf32>
    %73 = tpu.matmul %71, %72, %cst_34 {dimension_numbers = #tpu.dot_dimension_numbers<[1], [0], [0], [1], [0, 0, 1, 1], [], []>} : vector<128x128xbf16>, vector<128x128xbf16>, vector<128x128xf32> -> vector<128x128xf32>
    %74 = arith.truncf %73 : vector<128x128xf32> to vector<128x128xbf16>
    %c0_35 = arith.constant 0 : index
    %c0_36 = arith.constant 0 : index
    %75 = vector.load %arg10[%c0_35, %c0_36] : memref<1x128xbf16, #tpu.memory_space<vmem>>, vector<1x128xbf16>
    %cst_37 = arith.constant dense<0.000000e+00> : vector<1x128xf32>
    %76 = tpu.matmul %75, %74, %cst_37 {dimension_numbers = #tpu.dot_dimension_numbers<[1], [1], [0], [0], [0, 0, 1, 0], [], []>} : vector<1x128xbf16>, vector<128x128xbf16>, vector<1x128xf32> -> vector<1x128xf32>
    %77 = vector.extract_strided_slice %73 {offsets = [0, 8], sizes = [128, 1], strides = [1, 1]} : vector<128x128xf32> to vector<128x1xf32>
    %78 = vector.broadcast %76 : vector<1x128xf32> to vector<128x128xf32>
    %79 = vector.broadcast %77 : vector<128x1xf32> to vector<128x128xf32>
    %80 = arith.addf %78, %79 : vector<128x128xf32>
    %cst_38 = arith.constant 2.000000e-01 : f32
    %81 = vector.broadcast %cst_38 : f32 to vector<128x128xf32>
    %82 = arith.mulf %81, %80 : vector<128x128xf32>
    %83 = arith.maximumf %80, %82 : vector<128x128xf32>
    %cst_39 = arith.constant -1.000000e+30 : f32
    %84 = vector.broadcast %cst_39 : f32 to vector<128x128xf32>
    %85 = arith.select %2, %83, %84 : vector<128x128xi1>, vector<128x128xf32>
    %cst_40 = arith.constant dense<0xFF800000> : vector<128xf32>
    %86 = vector.multi_reduction <maximumf>, %85, %cst_40 [1] : vector<128x128xf32> to vector<128xf32>
    %87 = vector.shape_cast %86 : vector<128xf32> to vector<128x1xf32>
    %88 = vector.broadcast %87 : vector<128x1xf32> to vector<128x128xf32>
    %89 = arith.subf %85, %88 : vector<128x128xf32>
    %90 = math.exp %89 : vector<128x128xf32>
    %cst_41 = arith.constant dense<0.000000e+00> : vector<128xf32>
    %91 = vector.multi_reduction <add>, %90, %cst_41 [1] : vector<128x128xf32> to vector<128xf32>
    %92 = vector.shape_cast %91 : vector<128xf32> to vector<128x1xf32>
    %cst_42 = arith.constant 1.000000e-30 : f32
    %93 = vector.broadcast %cst_42 : f32 to vector<128x1xf32>
    %94 = arith.maximumf %92, %93 : vector<128x1xf32>
    %95 = tpu.reciprocal %94 {approx = true} : vector<128x1xf32> -> vector<128x1xf32>
    %96 = vector.broadcast %95 : vector<128x1xf32> to vector<128x128xf32>
    %97 = arith.mulf %90, %96 : vector<128x128xf32>
    %98 = arith.truncf %97 : vector<128x128xf32> to vector<128x128xbf16>
    %cst_43 = arith.constant dense<0.000000e+00> : vector<128x128xf32>
    %99 = tpu.matmul %98, %74, %cst_43 {dimension_numbers = #tpu.dot_dimension_numbers<[1], [0], [0], [1], [0, 0, 1, 1], [], []>} : vector<128x128xbf16>, vector<128x128xbf16>, vector<128x128xf32> -> vector<128x128xf32>
    %c0_44 = arith.constant 0 : index
    %c0_45 = arith.constant 0 : index
    %100 = vector.load %arg11[%c0_44, %c0_45] : memref<1x128xf32, #tpu.memory_space<vmem>>, vector<1x128xf32>
    %101 = vector.broadcast %100 : vector<1x128xf32> to vector<128x128xf32>
    %102 = arith.addf %99, %101 : vector<128x128xf32>
    %c0_46 = arith.constant 0 : index
    %c0_47 = arith.constant 0 : index
    %103 = vector.load %arg12[%c0_46, %c0_47] : memref<128x128xf32, #tpu.memory_space<vmem>>, vector<128x128xf32>
    tpu.vector_store %arg12[%c0_46, %c0_47], %102 {strides = array<i32>} : memref<128x128xf32, #tpu.memory_space<vmem>>, vector<128x128xf32>,
    return
  }
  func.func @transform_0(%arg0: i32) -> (i32, i32) {
    %c0_i32 = arith.constant 0 : i32
    %c0_i32_0 = arith.constant 0 : i32
    %c0_i32_1 = arith.constant 0 : i32
    return %c0_i32, %c0_i32_0 : i32, i32
  }
  func.func @transform_1(%arg0: i32) -> (i32, i32) {
    %c0_i32 = arith.constant 0 : i32
    %c0_i32_0 = arith.constant 0 : i32
    %c0_i32_1 = arith.constant 0 : i32
    return %c0_i32, %c0_i32_0 : i32, i32
  }
  func.func @transform_2(%arg0: i32) -> (i32, i32) {
    %c0_i32 = arith.constant 0 : i32
    %c0_i32_0 = arith.constant 0 : i32
    %c0_i32_1 = arith.constant 0 : i32
    return %c0_i32, %c0_i32_0 : i32, i32
  }
  func.func @transform_3(%arg0: i32) -> (i32, i32) {
    %c0_i32 = arith.constant 0 : i32
    %c0_i32_0 = arith.constant 0 : i32
    %c0_i32_1 = arith.constant 0 : i32
    return %c0_i32, %c0_i32_0 : i32, i32
  }
  func.func @transform_4(%arg0: i32) -> (i32, i32) {
    %c0_i32 = arith.constant 0 : i32
    %c0_i32_0 = arith.constant 0 : i32
    %c0_i32_1 = arith.constant 0 : i32
    return %c0_i32, %c0_i32_0 : i32, i32
  }
  func.func @transform_5(%arg0: i32) -> (i32, i32) {
    %c0_i32 = arith.constant 0 : i32
    %c0_i32_0 = arith.constant 0 : i32
    %c0_i32_1 = arith.constant 0 : i32
    return %c0_i32, %c0_i32_0 : i32, i32
  }
  func.func @transform_6(%arg0: i32) -> (i32, i32) {
    %c0_i32 = arith.constant 0 : i32
    %c0_i32_0 = arith.constant 0 : i32
    %c0_i32_1 = arith.constant 0 : i32
    return %c0_i32, %c0_i32_0 : i32, i32
  }
  func.func @transform_7(%arg0: i32) -> (i32, i32) {
    %c0_i32 = arith.constant 0 : i32
    %c0_i32_0 = arith.constant 0 : i32
    %c0_i32_1 = arith.constant 0 : i32
    return %c0_i32, %c0_i32_0 : i32, i32
  }
  func.func @transform_8(%arg0: i32) -> (i32, i32) {
    %c0_i32 = arith.constant 0 : i32
    %c0_i32_0 = arith.constant 0 : i32
    %c0_i32_1 = arith.constant 0 : i32
    return %c0_i32, %c0_i32_0 : i32, i32
  }
  func.func @transform_9(%arg0: i32) -> (i32, i32) {
    %c0_i32 = arith.constant 0 : i32
    %c0_i32_0 = arith.constant 0 : i32
    %c0_i32_1 = arith.constant 0 : i32
    return %c0_i32, %c0_i32_0 : i32, i32
  }
  func.func @transform_10(%arg0: i32) -> (i32, i32) {
    %c0_i32 = arith.constant 0 : i32
    %c0_i32_0 = arith.constant 0 : i32
    %c0_i32_1 = arith.constant 0 : i32
    return %c0_i32, %c0_i32_0 : i32, i32
  }
  func.func @transform_11(%arg0: i32) -> (i32, i32) {
    %c0_i32 = arith.constant 0 : i32
    %c0_i32_0 = arith.constant 0 : i32
    %c0_i32_1 = arith.constant 0 : i32
    return %c0_i32, %c0_i32_0 : i32, i32
  }
}

</mosaic_0001>

<llo_original>
// kernel: tpu_custom_call.1
$region0: #{tpu_custom_call.1}
  #allocation0 [shape = 'u32[]', space=smem, size = 0x4, offset = 0x4, fixed_abs, tag = 'smem constant byte address 0x4 - core index']
  #allocation1 [shape = 'u32[144,128]{1,0:T(1,128)}', space=vmem, size = 0x12000, scoped, tag = 'internal scratch']
  %s0 = inlined_call_operand.hbm [shape: bf16[128,128], index: 0, kind: input, shape index: {}]
  %s1 = inlined_call_operand.hbm [shape: s8[128,128], index: 1, kind: input, shape index: {}]
  %s2 = inlined_call_operand.hbm [shape: bf16[128,128], index: 2, kind: input, shape index: {}]
  %s3 = inlined_call_operand.vmem [shape: bf16[1,128], index: 3, kind: input, shape index: {}]
  %s4 = inlined_call_operand.vmem [shape: f32[1,128], index: 4, kind: input, shape index: {}]
  %s5 = inlined_call_operand.hbm [shape: bf16[128,128], index: 5, kind: input, shape index: {}]
  %s6 = inlined_call_operand.vmem [shape: bf16[1,128], index: 6, kind: input, shape index: {}]
  %s7 = inlined_call_operand.vmem [shape: f32[1,128], index: 7, kind: input, shape index: {}]
  %s8 = inlined_call_operand.hbm [shape: bf16[128,128], index: 8, kind: input, shape index: {}]
  %s9 = inlined_call_operand.vmem [shape: bf16[1,128], index: 9, kind: input, shape index: {}]
  %s10 = inlined_call_operand.vmem [shape: f32[1,128], index: 10, kind: input, shape index: {}]
  %s11 = inlined_call_operand.hbm [shape: f32[128,128], index: 11, kind: output, shape index: {}]
  %s12 = sld [smem:[#allocation0]]
  $region74: #{tpu_custom_call.1} parent=0
    _
  %s14 = ssub.s32 1, %s12
  %s15 = scalar_select 0, %s14, %s12
  $region1: #{tpu_custom_call.1} parent=0
    #allocation2 [shape = 'u8[32768]{0}', space=vmem, size = 0x8000, scoped, tag = 'input window, operand 0, single buffered']
    #allocation3 [shape = 's32[1]{0}', space=sflag, size = 0x4, scoped, tag = 'scoped memory for tpu_custom_call.1']
    #allocation4 [shape = 's32[1]{0}', space=sflag, size = 0x4, scoped, tag = 'scoped memory for tpu_custom_call.1']
    #allocation5 [shape = 'u8[16384]{0}', space=vmem, size = 0x4000, scoped, tag = 'input window, operand 1, single buffered']
    #allocation6 [shape = 's32[1]{0}', space=sflag, size = 0x4, scoped, tag = 'scoped memory for tpu_custom_call.1']
    #allocation7 [shape = 'u8[32768]{0}', space=vmem, size = 0x8000, scoped, tag = 'input window, operand 2, single buffered']
    #allocation8 [shape = 'u8[32768]{0}', space=vmem, size = 0x8000, scoped, tag = 'input window, operand 5, single buffered']
    #allocation9 [shape = 's32[1]{0}', space=sflag, size = 0x4, scoped, tag = 'scoped memory for tpu_custom_call.1']
    #allocation10 [shape = 'u8[32768]{0}', space=vmem, size = 0x8000, scoped, tag = 'input window, operand 8, single buffered']
    #allocation11 [shape = 'u8[65536]{0}', space=vmem, size = 0x10000, scoped, tag = 'output window, operand 0, single buffered']
    %16 = vsyncpa [#allocation3], 0
    %17 = vsyncpa [#allocation6], 0
    %18 = vsyncpa [#allocation9], 0
    %19 = vsyncpa [#allocation4], 0
    // Predicated region
    $region2: #{tpu_custom_call.1} parent=1 // pred_check
      _
    $region3: #{tpu_custom_call.1} parent=1 // pred_check_branch
      %21 = sbr.rel (0) target = $region5
    $region4: #{tpu_custom_call.1} parent=1 // pred_region
      %s23 = ssub.s32 1024, 1024
      %24 = vsyncadd [#allocation3], %s23
      %s25 = sshll.u32 [#allocation2], 4
      %s26 = int_to_ptr.vmem [resolvable:$true] %s25
      %31 = dma.hbm_to_vmem [thread:$0]  %s0, 1024, %s26, [#allocation3], 64, 64, 4
    $region5: #{tpu_custom_call.1} parent=1 // pred_fallthru
      _
    // Predicated region
    $region6: #{tpu_custom_call.1} parent=1 // pred_check
      _
    $region7: #{tpu_custom_call.1} parent=1 // pred_check_branch
      %33 = sbr.rel (0) target = $region9
    $region8: #{tpu_custom_call.1} parent=1 // pred_region
      %s35 = ssub.s32 512, 512
      %36 = vsyncadd [#allocation6], %s35
      %s37 = sshll.u32 [#allocation5], 4
      %s38 = int_to_ptr.vmem [resolvable:$true] %s37
      %43 = dma.hbm_to_vmem [thread:$0]  %s1, 512, %s38, [#allocation6], 128, 128, 8
    $region9: #{tpu_custom_call.1} parent=1 // pred_fallthru
      _
    // Predicated region
    $region10: #{tpu_custom_call.1} parent=1 // pred_check
      _
    $region11: #{tpu_custom_call.1} parent=1 // pred_check_branch
      %45 = sbr.rel (0) target = $region13
    $region12: #{tpu_custom_call.1} parent=1 // pred_region
      %s47 = ssub.s32 1024, 1024
      %48 = vsyncadd [#allocation6], %s47
      %s49 = sshll.u32 [#allocation7], 4
      %s50 = int_to_ptr.vmem [resolvable:$true] %s49
      %55 = dma.hbm_to_vmem [thread:$0]  %s2, 1024, %s50, [#allocation6], 64, 64, 4
    $region13: #{tpu_custom_call.1} parent=1 // pred_fallthru
      _
    // Predicated region
    $region14: #{tpu_custom_call.1} parent=1 // pred_check
      _
    $region15: #{tpu_custom_call.1} parent=1 // pred_check_branch
      %57 = sbr.rel (0) target = $region17
    $region16: #{tpu_custom_call.1} parent=1 // pred_region
      _
    $region17: #{tpu_custom_call.1} parent=1 // pred_fallthru
      _
    // Predicated region
    $region18: #{tpu_custom_call.1} parent=1 // pred_check
      _
    $region19: #{tpu_custom_call.1} parent=1 // pred_check_branch
      %59 = sbr.rel (0) target = $region21
    $region20: #{tpu_custom_call.1} parent=1 // pred_region
      _
    $region21: #{tpu_custom_call.1} parent=1 // pred_fallthru
      _
    // Predicated region
    $region22: #{tpu_custom_call.1} parent=1 // pred_check
      _
    $region23: #{tpu_custom_call.1} parent=1 // pred_check_branch
      %61 = sbr.rel (0) target = $region25
    $region24: #{tpu_custom_call.1} parent=1 // pred_region
      %s63 = ssub.s32 1024, 1024
      %64 = vsyncadd [#allocation9], %s63
      %s65 = sshll.u32 [#allocation8], 4
      %s66 = int_to_ptr.vmem [resolvable:$true] %s65
      %71 = dma.hbm_to_vmem [thread:$0]  %s5, 1024, %s66, [#allocation9], 64, 64, 4
    $region25: #{tpu_custom_call.1} parent=1 // pred_fallthru
      _
    // Predicated region
    $region26: #{tpu_custom_call.1} parent=1 // pred_check
      _
    $region27: #{tpu_custom_call.1} parent=1 // pred_check_branch
      %73 = sbr.rel (0) target = $region29
    $region28: #{tpu_custom_call.1} parent=1 // pred_region
      _
    $region29: #{tpu_custom_call.1} parent=1 // pred_fallthru
      _
    // Predicated region
    $region30: #{tpu_custom_call.1} parent=1 // pred_check
      _
    $region31: #{tpu_custom_call.1} parent=1 // pred_check_branch
      %75 = sbr.rel (0) target = $region33
    $region32: #{tpu_custom_call.1} parent=1 // pred_region
      _
    $region33: #{tpu_custom_call.1} parent=1 // pred_fallthru
      _
    // Predicated region
    $region34: #{tpu_custom_call.1} parent=1 // pred_check
      _
    $region35: #{tpu_custom_call.1} parent=1 // pred_check_branch
      %77 = sbr.rel (0) target = $region37
    $region36: #{tpu_custom_call.1} parent=1 // pred_region
      %s79 = ssub.s32 1024, 1024
      %80 = vsyncadd [#allocation9], %s79
      %s81 = sshll.u32 [#allocation10], 4
      %s82 = int_to_ptr.vmem [resolvable:$true] %s81
      %87 = dma.hbm_to_vmem [thread:$0]  %s8, 1024, %s82, [#allocation9], 64, 64, 4
    $region37: #{tpu_custom_call.1} parent=1 // pred_fallthru
      _
    // Predicated region
    $region38: #{tpu_custom_call.1} parent=1 // pred_check
      _
    $region39: #{tpu_custom_call.1} parent=1 // pred_check_branch
      %89 = sbr.rel (0) target = $region41
    $region40: #{tpu_custom_call.1} parent=1 // pred_region
      _
    $region41: #{tpu_custom_call.1} parent=1 // pred_fallthru
      _
    // Predicated region
    $region42: #{tpu_custom_call.1} parent=1 // pred_check
      _
    $region43: #{tpu_custom_call.1} parent=1 // pred_check_branch
      %91 = sbr.rel (0) target = $region45
    $region44: #{tpu_custom_call.1} parent=1 // pred_region
      _
    $region45: #{tpu_custom_call.1} parent=1 // pred_fallthru
      _
    // Predicated region
    $region46: #{tpu_custom_call.1} parent=1 // pred_check
      _
    $region47: #{tpu_custom_call.1} parent=1 // pred_check_branch
      %93 = sbr.rel (0) target = $region49
    $region48: #{tpu_custom_call.1} parent=1 // pred_region
      %94 = dma.done [#allocation3], 1024
    $region49: #{tpu_custom_call.1} parent=1 // pred_fallthru
      _
    // Predicated region
    $region50: #{tpu_custom_call.1} parent=1 // pred_check
      _
    $region51: #{tpu_custom_call.1} parent=1 // pred_check_branch
      %96 = sbr.rel (0) target = $region53
    $region52: #{tpu_custom_call.1} parent=1 // pred_region
      %97 = dma.done [#allocation6], 512
    $region53: #{tpu_custom_call.1} parent=1 // pred_fallthru
      _
    // Predicated region
    $region54: #{tpu_custom_call.1} parent=1 // pred_check
      _
    $region55: #{tpu_custom_call.1} parent=1 // pred_check_branch
      %99 = sbr.rel (0) target = $region57
    $region56: #{tpu_custom_call.1} parent=1 // pred_region
      %100 = dma.done [#allocation6], 1024
    $region57: #{tpu_custom_call.1} parent=1 // pred_fallthru
      _
    // Predicated region
    $region58: #{tpu_custom_call.1} parent=1 // pred_check
      _
    $region59: #{tpu_custom_call.1} parent=1 // pred_check_branch
      %102 = sbr.rel (0) target = $region61
    $region60: #{tpu_custom_call.1} parent=1 // pred_region
      %103 = dma.done [#allocation9], 1024
    $region61: #{tpu_custom_call.1} parent=1 // pred_fallthru
      _
    // Predicated region
    $region62: #{tpu_custom_call.1} parent=1 // pred_check
      _
    $region63: #{tpu_custom_call.1} parent=1 // pred_check_branch
      %105 = sbr.rel (0) target = $region65
    $region64: #{tpu_custom_call.1} parent=1 // pred_region
      %106 = dma.done [#allocation9], 1024
    $region65: #{tpu_custom_call.1} parent=1 // pred_fallthru
      _
    %v110 = vld [vmem:[#allocation5] sm:$0xff]
    %v111 = vld [vmem:[#allocation5 + $0x8] sm:$0xff]
    %v112 = vld [vmem:[#allocation5 + $0x10] sm:$0xff]
    %v113 = vld [vmem:[#allocation5 + $0x18] sm:$0xff]
    %vm114 = vnez %v110
    %vm115 = vnez %v111
    %vm116 = vnez %v112
    %vm117 = vnez %v113
    %v118 = vld [vmem:[#allocation2] sm:$0xf]
    %v119 = vld [vmem:[#allocation2 + $0x4] sm:$0xf]
    %v120 = vld [vmem:[#allocation2 + $0x8] sm:$0xf]
    %v121 = vld [vmem:[#allocation2 + $0xc] sm:$0xf]
    %v122 = vld [vmem:[#allocation2 + $0x10] sm:$0xf]
    %v123 = vld [vmem:[#allocation2 + $0x14] sm:$0xf]
    %v124 = vld [vmem:[#allocation2 + $0x18] sm:$0xf]
    %v125 = vld [vmem:[#allocation2 + $0x1c] sm:$0xf]
    %v126 = vld [vmem:[#allocation2 + $0x20] sm:$0xf]
    %v127 = vld [vmem:[#allocation2 + $0x24] sm:$0xf]
    %v128 = vld [vmem:[#allocation2 + $0x28] sm:$0xf]
    %v129 = vld [vmem:[#allocation2 + $0x2c] sm:$0xf]
    %v130 = vld [vmem:[#allocation2 + $0x30] sm:$0xf]
    %v131 = vld [vmem:[#allocation2 + $0x34] sm:$0xf]
    %v132 = vld [vmem:[#allocation2 + $0x38] sm:$0xf]
    %v133 = vld [vmem:[#allocation2 + $0x3c] sm:$0xf]
    %v134 = vld [vmem:[#allocation7] sm:$0xf]
    %v135 = vld [vmem:[#allocation7 + $0x4] sm:$0xf]
    %v136 = vld [vmem:[#allocation7 + $0x8] sm:$0xf]
    %v137 = vld [vmem:[#allocation7 + $0xc] sm:$0xf]
    %v138 = vld [vmem:[#allocation7 + $0x10] sm:$0xf]
    %v139 = vld [vmem:[#allocation7 + $0x14] sm:$0xf]
    %v140 = vld [vmem:[#allocation7 + $0x18] sm:$0xf]
    %v141 = vld [vmem:[#allocation7 + $0x1c] sm:$0xf]
    %v142 = vld [vmem:[#allocation7 + $0x20] sm:$0xf]
    %v143 = vld [vmem:[#allocation7 + $0x24] sm:$0xf]
    %v144 = vld [vmem:[#allocation7 + $0x28] sm:$0xf]
    %v145 = vld [vmem:[#allocation7 + $0x2c] sm:$0xf]
    %v146 = vld [vmem:[#allocation7 + $0x30] sm:$0xf]
    %v147 = vld [vmem:[#allocation7 + $0x34] sm:$0xf]
    %v148 = vld [vmem:[#allocation7 + $0x38] sm:$0xf]
    %v149 = vld [vmem:[#allocation7 + $0x3c] sm:$0xf]
    %v166 = vunpack.c.l.b16 %v118
    %v167 = vunpack.c.l.b16 %v119
    %v168 = vunpack.c.l.b16 %v120
    %v169 = vunpack.c.l.b16 %v121
    %v170 = vunpack.c.l.b16 %v122
    %v171 = vunpack.c.l.b16 %v123
    %v172 = vunpack.c.l.b16 %v124
    %v173 = vunpack.c.l.b16 %v125
    %v174 = vunpack.c.l.b16 %v126
    %v175 = vunpack.c.l.b16 %v127
    %v176 = vunpack.c.l.b16 %v128
    %v177 = vunpack.c.l.b16 %v129
    %v178 = vunpack.c.l.b16 %v130
    %v179 = vunpack.c.l.b16 %v131
    %v180 = vunpack.c.l.b16 %v132
    %v181 = vunpack.c.l.b16 %v133
    %v182 = vpack.c.b16 %v167, %v166
    %v183 = vpack.c.b16 %v169, %v168
    %v184 = vpack.c.b16 %v171, %v170
    %v185 = vpack.c.b16 %v173, %v172
    %v186 = vpack.c.b16 %v175, %v174
    %v187 = vpack.c.b16 %v177, %v176
    %v188 = vpack.c.b16 %v179, %v178
    %v189 = vpack.c.b16 %v181, %v180
    %v214 = vunpack.c.l.b16 %v134
    %v215 = vunpack.c.l.b16 %v135
    %v216 = vunpack.c.l.b16 %v136
    %v217 = vunpack.c.l.b16 %v137
    %v218 = vunpack.c.l.b16 %v138
    %v219 = vunpack.c.l.b16 %v139
    %v220 = vunpack.c.l.b16 %v140
    %v221 = vunpack.c.l.b16 %v141
    %v222 = vunpack.c.l.b16 %v142
    %v223 = vunpack.c.l.b16 %v143
    %v224 = vunpack.c.l.b16 %v144
    %v225 = vunpack.c.l.b16 %v145
    %v226 = vunpack.c.l.b16 %v146
    %v227 = vunpack.c.l.b16 %v147
    %v228 = vunpack.c.l.b16 %v148
    %v229 = vunpack.c.l.b16 %v149
    %v230 = vpack.c.b16 %v215, %v214
    %v231 = vpack.c.b16 %v217, %v216
    %v232 = vpack.c.b16 %v219, %v218
    %v233 = vpack.c.b16 %v221, %v220
    %v234 = vpack.c.b16 %v223, %v222
    %v235 = vpack.c.b16 %v225, %v224
    %v236 = vpack.c.b16 %v227, %v226
    %v237 = vpack.c.b16 %v229, %v228
    %246 = vmatprep.subr.bf16.mxu0 0
    %247 = vmatpush1.bf16.msra.mxu0 %v230
    %248 = vmatprep.subr.bf16.mxu0 0
    %249 = vmatpush1.bf16.msra.mxu0 %v231
    %250 = vmatprep.subr.bf16.mxu0 0
    %251 = vmatpush1.bf16.msra.mxu0 %v232
    %252 = vmatprep.subr.bf16.mxu0 0
    %253 = vmatpush1.bf16.msra.mxu0 %v233
    %254 = vmatprep.subr.bf16.mxu0 0
    %255 = vmatpush1.bf16.msra.mxu0 %v234
    %256 = vmatprep.subr.bf16.mxu0 0
    %257 = vmatpush1.bf16.msra.mxu0 %v235
    %258 = vmatprep.subr.bf16.mxu0 0
    %259 = vmatpush1.bf16.msra.mxu0 %v236
    %260 = vmatprep.subr.bf16.mxu0 0
    %261 = vmatpush1.bf16.msra.mxu0 %v237
    %262 = vmatprep.subr.bf16.mxu0 0
    %263 = vmatpush1.bf16.msra.mxu0 0
    %264 = vmatprep.subr.bf16.mxu0 0
    %265 = vmatpush1.bf16.msra.mxu0 0
    %266 = vmatprep.subr.bf16.mxu0 0
    %267 = vmatpush1.bf16.msra.mxu0 0
    %268 = vmatprep.subr.bf16.mxu0 0
    %269 = vmatpush1.bf16.msra.mxu0 0
    %270 = vmatprep.subr.bf16.mxu0 0
    %271 = vmatpush1.bf16.msra.mxu0 0
    %272 = vmatprep.subr.bf16.mxu0 0
    %273 = vmatpush1.bf16.msra.mxu0 0
    %274 = vmatprep.subr.bf16.mxu0 0
    %275 = vmatpush1.bf16.msra.mxu0 0
    %276 = vmatprep.subr.bf16.mxu0 0
    %277 = vmatpush1.bf16.msra.mxu0 0
    %278 = vmatprep.mubr.bf16.mxu0 0
    %279 = vmatmul.mubr.bf16.gmra.mrb[0].mxu0 %v182
    %v280 = vpop.f32.mrb[0].mxu0
    %v281 = vadd.f32 0.0, %v280
    %v282 = vpop.f32.mrb[0].mxu0
    %v283 = vpop.f32.mrb[0].mxu0
    %v284 = vadd.f32 0.0, %v283
    %v285 = vpop.f32.mrb[0].mxu0
    %286 = vmatprep.mubr.bf16.mxu0 0
    %287 = vmatmul.mubr.bf16.gmra.mrb[0].mxu0 %v183
    %v288 = vpop.f32.mrb[0].mxu0
    %v289 = vadd.f32 0.0, %v288
    %v290 = vpop.f32.mrb[0].mxu0
    %v291 = vpop.f32.mrb[0].mxu0
    %v292 = vadd.f32 0.0, %v291
    %v293 = vpop.f32.mrb[0].mxu0
    %294 = vmatprep.mubr.bf16.mxu0 0
    %295 = vmatmul.mubr.bf16.gmra.mrb[0].mxu0 %v184
    %v296 = vpop.f32.mrb[0].mxu0
    %v297 = vadd.f32 0.0, %v296
    %v298 = vpop.f32.mrb[0].mxu0
    %v299 = vpop.f32.mrb[0].mxu0
    %v300 = vadd.f32 0.0, %v299
    %v301 = vpop.f32.mrb[0].mxu0
    %302 = vmatprep.mubr.bf16.mxu0 0
    %303 = vmatmul.mubr.bf16.gmra.mrb[0].mxu0 %v185
    %v304 = vpop.f32.mrb[0].mxu0
    %v305 = vadd.f32 0.0, %v304
    %v306 = vpop.f32.mrb[0].mxu0
    %v307 = vpop.f32.mrb[0].mxu0
    %v308 = vadd.f32 0.0, %v307
    %v309 = vpop.f32.mrb[0].mxu0
    %310 = vmatprep.mubr.bf16.mxu0 0
    %311 = vmatmul.mubr.bf16.gmra.mrb[0].mxu0 %v186
    %v312 = vpop.f32.mrb[0].mxu0
    %v313 = vadd.f32 0.0, %v312
    %v314 = vpop.f32.mrb[0].mxu0
    %v315 = vpop.f32.mrb[0].mxu0
    %v316 = vadd.f32 0.0, %v315
    %v317 = vpop.f32.mrb[0].mxu0
    %318 = vmatprep.mubr.bf16.mxu0 0
    %319 = vmatmul.mubr.bf16.gmra.mrb[0].mxu0 %v187
    %v320 = vpop.f32.mrb[0].mxu0
    %v321 = vadd.f32 0.0, %v320
    %v322 = vpop.f32.mrb[0].mxu0
    %v323 = vpop.f32.mrb[0].mxu0
    %v324 = vadd.f32 0.0, %v323
    %v325 = vpop.f32.mrb[0].mxu0
    %326 = vmatprep.mubr.bf16.mxu0 0
    %327 = vmatmul.mubr.bf16.gmra.mrb[0].mxu0 %v188
    %v328 = vpop.f32.mrb[0].mxu0
    %v329 = vadd.f32 0.0, %v328
    %v330 = vpop.f32.mrb[0].mxu0
    %v331 = vpop.f32.mrb[0].mxu0
    %v332 = vadd.f32 0.0, %v331
    %v333 = vpop.f32.mrb[0].mxu0
    %334 = vmatprep.mubr.bf16.mxu0 0
    %335 = vmatmul.mubr.bf16.gmra.mrb[0].mxu0 %v189
    %v336 = vpop.f32.mrb[0].mxu0
    %v337 = vadd.f32 0.0, %v336
    %v338 = vpop.f32.mrb[0].mxu0
    %v339 = vpop.f32.mrb[0].mxu0
    %v340 = vadd.f32 0.0, %v339
    %v341 = vpop.f32.mrb[0].mxu0
    %342 = vdwg.mxu0
    %v343 = vpack.c.bf16 %v284, %v281
    %v344 = vpack.c.bf16 %v292, %v289
    %v345 = vpack.c.bf16 %v300, %v297
    %v346 = vpack.c.bf16 %v308, %v305
    %v347 = vpack.c.bf16 %v316, %v313
    %v348 = vpack.c.bf16 %v324, %v321
    %v349 = vpack.c.bf16 %v332, %v329
    %v350 = vpack.c.bf16 %v340, %v337
    %v351 = vld [vmem:[%s3] sm:$0x1]
    %352 = vmatprep.subr.bf16.mxu0 0
    %353 = vmatpush1.bf16.xpose.msra.mxu0 %v343
    %354 = vmatprep.subr.bf16.mxu0 0
    %355 = vmatpush1.bf16.xpose.msra.mxu0 %v344
    %356 = vmatprep.subr.bf16.mxu0 0
    %357 = vmatpush1.bf16.xpose.msra.mxu0 %v345
    %358 = vmatprep.subr.bf16.mxu0 0
    %359 = vmatpush1.bf16.xpose.msra.mxu0 %v346
    %360 = vmatprep.subr.bf16.mxu0 0
    %361 = vmatpush1.bf16.xpose.msra.mxu0 %v347
    %362 = vmatprep.subr.bf16.mxu0 0
    %363 = vmatpush1.bf16.xpose.msra.mxu0 %v348
    %364 = vmatprep.subr.bf16.mxu0 0
    %365 = vmatpush1.bf16.xpose.msra.mxu0 %v349
    %366 = vmatprep.subr.bf16.mxu0 0
    %367 = vmatpush1.bf16.xpose.msra.mxu0 %v350
    %368 = vmatprep.subr.bf16.mxu0 0
    %369 = vmatpush1.bf16.xpose.msra.mxu0 0
    %370 = vmatprep.subr.bf16.mxu0 0
    %371 = vmatpush1.bf16.xpose.msra.mxu0 0
    %372 = vmatprep.subr.bf16.mxu0 0
    %373 = vmatpush1.bf16.xpose.msra.mxu0 0
    %374 = vmatprep.subr.bf16.mxu0 0
    %375 = vmatpush1.bf16.xpose.msra.mxu0 0
    %376 = vmatprep.subr.bf16.mxu0 0
    %377 = vmatpush1.bf16.xpose.msra.mxu0 0
    %378 = vmatprep.subr.bf16.mxu0 0
    %379 = vmatpush1.bf16.xpose.msra.mxu0 0
    %380 = vmatprep.subr.bf16.mxu0 0
    %381 = vmatpush1.bf16.xpose.msra.mxu0 0
    %382 = vmatprep.subr.bf16.mxu0 0
    %383 = vmatpush1.bf16.xpose.msra.mxu0 0
    %384 = vmatprep.mubr.bf16.mxu0 0
    %385 = vmatmul.mubr.bf16.gmra.mrb[0].mxu0 %v351
    %v386 = vpop.f32.mrb[0].mxu0
    %v387 = vadd.f32 0.0, %v386
    %v388 = vpop.f32.mrb[0].mxu0
    %v389 = vpop.f32.mrb[0].mxu0
    %v390 = vpop.f32.mrb[0].mxu0
    %391 = vdwg.mxu0
    %v392 = vlaneseq
    %v393 = vshrl.u32 %v392, 7
    %v394 = vsub.s32 0, %v393
    %v395 = vrot.slane %v387, %v394
    %397 = vset.pattern.permute.xlu0 32
    %398 = vperm.xlu0 %397, %v281
    %v399 = vpop.permute.xlu0 %398
    %402 = vset.pattern.permute.xlu0 32
    %403 = vperm.xlu0 %402, %v284
    %v404 = vpop.permute.xlu0 %403
    %407 = vset.pattern.permute.xlu0 32
    %408 = vperm.xlu0 %407, %v289
    %v409 = vpop.permute.xlu0 %408
    %412 = vset.pattern.permute.xlu0 32
    %413 = vperm.xlu0 %412, %v292
    %v414 = vpop.permute.xlu0 %413
    %417 = vset.pattern.permute.xlu0 32
    %418 = vperm.xlu0 %417, %v297
    %v419 = vpop.permute.xlu0 %418
    %422 = vset.pattern.permute.xlu0 32
    %423 = vperm.xlu0 %422, %v300
    %v424 = vpop.permute.xlu0 %423
    %427 = vset.pattern.permute.xlu0 32
    %428 = vperm.xlu0 %427, %v305
    %v429 = vpop.permute.xlu0 %428
    %432 = vset.pattern.permute.xlu0 32
    %433 = vperm.xlu0 %432, %v308
    %v434 = vpop.permute.xlu0 %433
    %437 = vset.pattern.permute.xlu0 32
    %438 = vperm.xlu0 %437, %v313
    %v439 = vpop.permute.xlu0 %438
    %442 = vset.pattern.permute.xlu0 32
    %443 = vperm.xlu0 %442, %v316
    %v444 = vpop.permute.xlu0 %443
    %447 = vset.pattern.permute.xlu0 32
    %448 = vperm.xlu0 %447, %v321
    %v449 = vpop.permute.xlu0 %448
    %452 = vset.pattern.permute.xlu0 32
    %453 = vperm.xlu0 %452, %v324
    %v454 = vpop.permute.xlu0 %453
    %457 = vset.pattern.permute.xlu0 32
    %458 = vperm.xlu0 %457, %v329
    %v459 = vpop.permute.xlu0 %458
    %462 = vset.pattern.permute.xlu0 32
    %463 = vperm.xlu0 %462, %v332
    %v464 = vpop.permute.xlu0 %463
    %467 = vset.pattern.permute.xlu0 32
    %468 = vperm.xlu0 %467, %v337
    %v469 = vpop.permute.xlu0 %468
    %472 = vset.pattern.permute.xlu0 32
    %473 = vperm.xlu0 %472, %v340
    %v474 = vpop.permute.xlu0 %473
    %v476 = vadd.f32 %v395, %v399
    %v477 = vadd.f32 %v395, %v404
    %v478 = vadd.f32 %v395, %v409
    %v479 = vadd.f32 %v395, %v414
    %v480 = vadd.f32 %v395, %v419
    %v481 = vadd.f32 %v395, %v424
    %v482 = vadd.f32 %v395, %v429
    %v483 = vadd.f32 %v395, %v434
    %v484 = vadd.f32 %v395, %v439
    %v485 = vadd.f32 %v395, %v444
    %v486 = vadd.f32 %v395, %v449
    %v487 = vadd.f32 %v395, %v454
    %v488 = vadd.f32 %v395, %v459
    %v489 = vadd.f32 %v395, %v464
    %v490 = vadd.f32 %v395, %v469
    %v491 = vadd.f32 %v395, %v474
    %v492 = vmul.f32 %v476, 0.2
    %v493 = vmul.f32 %v477, 0.2
    %v494 = vmul.f32 %v478, 0.2
    %v495 = vmul.f32 %v479, 0.2
    %v496 = vmul.f32 %v480, 0.2
    %v497 = vmul.f32 %v481, 0.2
    %v498 = vmul.f32 %v482, 0.2
    %v499 = vmul.f32 %v483, 0.2
    %v500 = vmul.f32 %v484, 0.2
    %v501 = vmul.f32 %v485, 0.2
    %v502 = vmul.f32 %v486, 0.2
    %v503 = vmul.f32 %v487, 0.2
    %v504 = vmul.f32 %v488, 0.2
    %v505 = vmul.f32 %v489, 0.2
    %v506 = vmul.f32 %v490, 0.2
    %v507 = vmul.f32 %v491, 0.2
    %v508 = vmax.f32 %v476, %v492
    %v509 = vmax.f32 %v477, %v493
    %v510 = vmax.f32 %v478, %v494
    %v511 = vmax.f32 %v479, %v495
    %v512 = vmax.f32 %v480, %v496
    %v513 = vmax.f32 %v481, %v497
    %v514 = vmax.f32 %v482, %v498
    %v515 = vmax.f32 %v483, %v499
    %v516 = vmax.f32 %v484, %v500
    %v517 = vmax.f32 %v485, %v501
    %v518 = vmax.f32 %v486, %v502
    %v519 = vmax.f32 %v487, %v503
    %v520 = vmax.f32 %v488, %v504
    %v521 = vmax.f32 %v489, %v505
    %v522 = vmax.f32 %v490, %v506
    %v523 = vmax.f32 %v491, %v507
    %v524 = vsel %vm114, 16843009, 0
    %v525 = vsel %vm115, 16843009, 0
    %v526 = vsel %vm116, 16843009, 0
    %v527 = vsel %vm117, 16843009, 0
    %v528 = vunpack.c.0.s8 %v524
    %v529 = vunpack.c.1.s8 %v524
    %v530 = vunpack.c.2.s8 %v524
    %v531 = vunpack.c.3.s8 %v524
    %v532 = vunpack.c.0.s8 %v525
    %v533 = vunpack.c.1.s8 %v525
    %v534 = vunpack.c.2.s8 %v525
    %v535 = vunpack.c.3.s8 %v525
    %v536 = vunpack.c.0.s8 %v526
    %v537 = vunpack.c.1.s8 %v526
    %v538 = vunpack.c.2.s8 %v526
    %v539 = vunpack.c.3.s8 %v526
    %v540 = vunpack.c.0.s8 %v527
    %v541 = vunpack.c.1.s8 %v527
    %v542 = vunpack.c.2.s8 %v527
    %v543 = vunpack.c.3.s8 %v527
    %v544 = vpack.c.b16 %v528, %v528
    %v545 = vpack.c.b8 %v544, %v544
    %v546 = vpack.c.b16 %v529, %v529
    %v547 = vpack.c.b8 %v546, %v546
    %v548 = vpack.c.b16 %v530, %v530
    %v549 = vpack.c.b8 %v548, %v548
    %v550 = vpack.c.b16 %v531, %v531
    %v551 = vpack.c.b8 %v550, %v550
    %v552 = vpack.c.b16 %v532, %v532
    %v553 = vpack.c.b8 %v552, %v552
    %v554 = vpack.c.b16 %v533, %v533
    %v555 = vpack.c.b8 %v554, %v554
    %v556 = vpack.c.b16 %v534, %v534
    %v557 = vpack.c.b8 %v556, %v556
    %v558 = vpack.c.b16 %v535, %v535
    %v559 = vpack.c.b8 %v558, %v558
    %v560 = vpack.c.b16 %v536, %v536
    %v561 = vpack.c.b8 %v560, %v560
    %v562 = vpack.c.b16 %v537, %v537
    %v563 = vpack.c.b8 %v562, %v562
    %v564 = vpack.c.b16 %v538, %v538
    %v565 = vpack.c.b8 %v564, %v564
    %v566 = vpack.c.b16 %v539, %v539
    %v567 = vpack.c.b8 %v566, %v566
    %v568 = vpack.c.b16 %v540, %v540
    %v569 = vpack.c.b8 %v568, %v568
    %v570 = vpack.c.b16 %v541, %v541
    %v571 = vpack.c.b8 %v570, %v570
    %v572 = vpack.c.b16 %v542, %v542
    %v573 = vpack.c.b8 %v572, %v572
    %v574 = vpack.c.b16 %v543, %v543
    %v575 = vpack.c.b8 %v574, %v574
    %vm576 = vnez %v545
    %vm577 = vnez %v547
    %vm578 = vnez %v549
    %vm579 = vnez %v551
    %vm580 = vnez %v553
    %vm581 = vnez %v555
    %vm582 = vnez %v557
    %vm583 = vnez %v559
    %vm584 = vnez %v561
    %vm585 = vnez %v563
    %vm586 = vnez %v565
    %vm587 = vnez %v567
    %vm588 = vnez %v569
    %vm589 = vnez %v571
    %vm590 = vnez %v573
    %vm591 = vnez %v575
    %v592 = vsel %vm576, 16843009, 0
    %v593 = vsel %vm577, 16843009, 0
    %v594 = vsel %vm578, 16843009, 0
    %v595 = vsel %vm579, 16843009, 0
    %v596 = vsel %vm580, 16843009, 0
    %v597 = vsel %vm581, 16843009, 0
    %v598 = vsel %vm582, 16843009, 0
    %v599 = vsel %vm583, 16843009, 0
    %v600 = vsel %vm584, 16843009, 0
    %v601 = vsel %vm585, 16843009, 0
    %v602 = vsel %vm586, 16843009, 0
    %v603 = vsel %vm587, 16843009, 0
    %v604 = vsel %vm588, 16843009, 0
    %v605 = vsel %vm589, 16843009, 0
    %v606 = vsel %vm590, 16843009, 0
    %v607 = vsel %vm591, 16843009, 0
    %v608 = vunpack.c.0.s8 %v592
    %v609 = vunpack.c.0.s8 %v593
    %v610 = vunpack.c.0.s8 %v594
    %v611 = vunpack.c.0.s8 %v595
    %v612 = vunpack.c.0.s8 %v596
    %v613 = vunpack.c.0.s8 %v597
    %v614 = vunpack.c.0.s8 %v598
    %v615 = vunpack.c.0.s8 %v599
    %v616 = vunpack.c.0.s8 %v600
    %v617 = vunpack.c.0.s8 %v601
    %v618 = vunpack.c.0.s8 %v602
    %v619 = vunpack.c.0.s8 %v603
    %v620 = vunpack.c.0.s8 %v604
    %v621 = vunpack.c.0.s8 %v605
    %v622 = vunpack.c.0.s8 %v606
    %v623 = vunpack.c.0.s8 %v607
    %vm624 = vcmp.ne.s32.totalorder %v608, 0
    %vm625 = vcmp.ne.s32.totalorder %v609, 0
    %vm626 = vcmp.ne.s32.totalorder %v610, 0
    %vm627 = vcmp.ne.s32.totalorder %v611, 0
    %vm628 = vcmp.ne.s32.totalorder %v612, 0
    %vm629 = vcmp.ne.s32.totalorder %v613, 0
    %vm630 = vcmp.ne.s32.totalorder %v614, 0
    %vm631 = vcmp.ne.s32.totalorder %v615, 0
    %vm632 = vcmp.ne.s32.totalorder %v616, 0
    %vm633 = vcmp.ne.s32.totalorder %v617, 0
    %vm634 = vcmp.ne.s32.totalorder %v618, 0
    %vm635 = vcmp.ne.s32.totalorder %v619, 0
    %vm636 = vcmp.ne.s32.totalorder %v620, 0
    %vm637 = vcmp.ne.s32.totalorder %v621, 0
    %vm638 = vcmp.ne.s32.totalorder %v622, 0
    %vm639 = vcmp.ne.s32.totalorder %v623, 0
    %v640 = vsel %vm624, %v508, -1e+30
    %v641 = vsel %vm625, %v509, -1e+30
    %v642 = vsel %vm626, %v510, -1e+30
    %v643 = vsel %vm627, %v511, -1e+30
    %v644 = vsel %vm628, %v512, -1e+30
    %v645 = vsel %vm629, %v513, -1e+30
    %v646 = vsel %vm630, %v514, -1e+30
    %v647 = vsel %vm631, %v515, -1e+30
    %v648 = vsel %vm632, %v516, -1e+30
    %v649 = vsel %vm633, %v517, -1e+30
    %v650 = vsel %vm634, %v518, -1e+30
    %v651 = vsel %vm635, %v519, -1e+30
    %v652 = vsel %vm636, %v520, -1e+30
    %v653 = vsel %vm637, %v521, -1e+30
    %v654 = vsel %vm638, %v522, -1e+30
    %v655 = vsel %vm639, %v523, -1e+30
    %656 = vmax.xlane.f32.xlu0 %v640
    %v657 = vpop.xlane.xlu0 %656
    %658 = vmax.xlane.f32.xlu0 %v641
    %v659 = vpop.xlane.xlu0 %658
    %660 = vmax.xlane.f32.xlu0 %v642
    %v661 = vpop.xlane.xlu0 %660
    %662 = vmax.xlane.f32.xlu0 %v643
    %v663 = vpop.xlane.xlu0 %662
    %664 = vmax.xlane.f32.xlu0 %v644
    %v665 = vpop.xlane.xlu0 %664
    %666 = vmax.xlane.f32.xlu0 %v645
    %v667 = vpop.xlane.xlu0 %666
    %668 = vmax.xlane.f32.xlu0 %v646
    %v669 = vpop.xlane.xlu0 %668
    %670 = vmax.xlane.f32.xlu0 %v647
    %v671 = vpop.xlane.xlu0 %670
    %672 = vmax.xlane.f32.xlu0 %v648
    %v673 = vpop.xlane.xlu0 %672
    %674 = vmax.xlane.f32.xlu0 %v649
    %v675 = vpop.xlane.xlu0 %674
    %676 = vmax.xlane.f32.xlu0 %v650
    %v677 = vpop.xlane.xlu0 %676
    %678 = vmax.xlane.f32.xlu0 %v651
    %v679 = vpop.xlane.xlu0 %678
    %680 = vmax.xlane.f32.xlu0 %v652
    %v681 = vpop.xlane.xlu0 %680
    %682 = vmax.xlane.f32.xlu0 %v653
    %v683 = vpop.xlane.xlu0 %682
    %684 = vmax.xlane.f32.xlu0 %v654
    %v685 = vpop.xlane.xlu0 %684
    %686 = vmax.xlane.f32.xlu0 %v655
    %v687 = vpop.xlane.xlu0 %686
    %v688 = vsub.f32 %v640, %v657
    %v689 = vsub.f32 %v641, %v659
    %v690 = vsub.f32 %v642, %v661
    %v691 = vsub.f32 %v643, %v663
    %v692 = vsub.f32 %v644, %v665
    %v693 = vsub.f32 %v645, %v667
    %v694 = vsub.f32 %v646, %v669
    %v695 = vsub.f32 %v647, %v671
    %v696 = vsub.f32 %v648, %v673
    %v697 = vsub.f32 %v649, %v675
    %v698 = vsub.f32 %v650, %v677
    %v699 = vsub.f32 %v651, %v679
    %v700 = vsub.f32 %v652, %v681
    %v701 = vsub.f32 %v653, %v683
    %v702 = vsub.f32 %v654, %v685
    %v703 = vsub.f32 %v655, %v687
    %v704 = vmul.f32 %v688, 1.442695
    %v705 = vpow.pop %v704
    %v706 = vmul.f32 %v689, 1.442695
    %v707 = vpow.pop %v706
    %v708 = vmul.f32 %v690, 1.442695
    %v709 = vpow.pop %v708
    %v710 = vmul.f32 %v691, 1.442695
    %v711 = vpow.pop %v710
    %v712 = vmul.f32 %v692, 1.442695
    %v713 = vpow.pop %v712
    %v714 = vmul.f32 %v693, 1.442695
    %v715 = vpow.pop %v714
    %v716 = vmul.f32 %v694, 1.442695
    %v717 = vpow.pop %v716
    %v718 = vmul.f32 %v695, 1.442695
    %v719 = vpow.pop %v718
    %v720 = vmul.f32 %v696, 1.442695
    %v721 = vpow.pop %v720
    %v722 = vmul.f32 %v697, 1.442695
    %v723 = vpow.pop %v722
    %v724 = vmul.f32 %v698, 1.442695
    %v725 = vpow.pop %v724
    %v726 = vmul.f32 %v699, 1.442695
    %v727 = vpow.pop %v726
    %v728 = vmul.f32 %v700, 1.442695
    %v729 = vpow.pop %v728
    %v730 = vmul.f32 %v701, 1.442695
    %v731 = vpow.pop %v730
    %v732 = vmul.f32 %v702, 1.442695
    %v733 = vpow.pop %v732
    %v734 = vmul.f32 %v703, 1.442695
    %v735 = vpow.pop %v734
    %736 = vadd.xlane.f32.xlu0 %v705
    %v737 = vpop.xlane.xlu0 %736
    %738 = vadd.xlane.f32.xlu0 %v707
    %v739 = vpop.xlane.xlu0 %738
    %740 = vadd.xlane.f32.xlu0 %v709
    %v741 = vpop.xlane.xlu0 %740
    %742 = vadd.xlane.f32.xlu0 %v711
    %v743 = vpop.xlane.xlu0 %742
    %744 = vadd.xlane.f32.xlu0 %v713
    %v745 = vpop.xlane.xlu0 %744
    %746 = vadd.xlane.f32.xlu0 %v715
    %v747 = vpop.xlane.xlu0 %746
    %748 = vadd.xlane.f32.xlu0 %v717
    %v749 = vpop.xlane.xlu0 %748
    %750 = vadd.xlane.f32.xlu0 %v719
    %v751 = vpop.xlane.xlu0 %750
    %752 = vadd.xlane.f32.xlu0 %v721
    %v753 = vpop.xlane.xlu0 %752
    %754 = vadd.xlane.f32.xlu0 %v723
    %v755 = vpop.xlane.xlu0 %754
    %756 = vadd.xlane.f32.xlu0 %v725
    %v757 = vpop.xlane.xlu0 %756
    %758 = vadd.xlane.f32.xlu0 %v727
    %v759 = vpop.xlane.xlu0 %758
    %760 = vadd.xlane.f32.xlu0 %v729
    %v761 = vpop.xlane.xlu0 %760
    %762 = vadd.xlane.f32.xlu0 %v731
    %v763 = vpop.xlane.xlu0 %762
    %764 = vadd.xlane.f32.xlu0 %v733
    %v765 = vpop.xlane.xlu0 %764
    %766 = vadd.xlane.f32.xlu0 %v735
    %v767 = vpop.xlane.xlu0 %766
    %v768 = vmax.f32 %v737, 1e-30
    %v769 = vmax.f32 %v739, 1e-30
    %v770 = vmax.f32 %v741, 1e-30
    %v771 = vmax.f32 %v743, 1e-30
    %v772 = vmax.f32 %v745, 1e-30
    %v773 = vmax.f32 %v747, 1e-30
    %v774 = vmax.f32 %v749, 1e-30
    %v775 = vmax.f32 %v751, 1e-30
    %v776 = vmax.f32 %v753, 1e-30
    %v777 = vmax.f32 %v755, 1e-30
    %v778 = vmax.f32 %v757, 1e-30
    %v779 = vmax.f32 %v759, 1e-30
    %v780 = vmax.f32 %v761, 1e-30
    %v781 = vmax.f32 %v763, 1e-30
    %v782 = vmax.f32 %v765, 1e-30
    %v783 = vmax.f32 %v767, 1e-30
    %v784 = vrcp.pop %v768
    %v785 = vrcp.pop %v769
    %v786 = vrcp.pop %v770
    %v787 = vrcp.pop %v771
    %v788 = vrcp.pop %v772
    %v789 = vrcp.pop %v773
    %v790 = vrcp.pop %v774
    %v791 = vrcp.pop %v775
    %v792 = vrcp.pop %v776
    %v793 = vrcp.pop %v777
    %v794 = vrcp.pop %v778
    %v795 = vrcp.pop %v779
    %v796 = vrcp.pop %v780
    %v797 = vrcp.pop %v781
    %v798 = vrcp.pop %v782
    %v799 = vrcp.pop %v783
    %v800 = vmul.f32 %v705, %v784
    %v801 = vmul.f32 %v707, %v785
    %v802 = vmul.f32 %v709, %v786
    %v803 = vmul.f32 %v711, %v787
    %v804 = vmul.f32 %v713, %v788
    %v805 = vmul.f32 %v715, %v789
    %v806 = vmul.f32 %v717, %v790
    %v807 = vmul.f32 %v719, %v791
    %v808 = vmul.f32 %v721, %v792
    %v809 = vmul.f32 %v723, %v793
    %v810 = vmul.f32 %v725, %v794
    %v811 = vmul.f32 %v727, %v795
    %v812 = vmul.f32 %v729, %v796
    %v813 = vmul.f32 %v731, %v797
    %v814 = vmul.f32 %v733, %v798
    %v815 = vmul.f32 %v735, %v799
    %v816 = vpack.c.bf16 %v801, %v800
    %v817 = vpack.c.bf16 %v803, %v802
    %v818 = vpack.c.bf16 %v805, %v804
    %v819 = vpack.c.bf16 %v807, %v806
    %v820 = vpack.c.bf16 %v809, %v808
    %v821 = vpack.c.bf16 %v811, %v810
    %v822 = vpack.c.bf16 %v813, %v812
    %v823 = vpack.c.bf16 %v815, %v814
    %v824 = vld [vmem:[%s4] sm:$0x1]
    %v826 = vlaneseq
    %v827 = vshrl.u32 %v826, 7
    %v828 = vsub.s32 0, %v827
    %v829 = vrot.slane %v824, %v828
    %831 = vmatprep.subr.bf16.mxu0 0
    %832 = vmatpush1.bf16.msra.mxu0 %v343
    %833 = vmatprep.subr.bf16.mxu0 0
    %834 = vmatpush1.bf16.msra.mxu0 %v344
    %835 = vmatprep.subr.bf16.mxu0 0
    %836 = vmatpush1.bf16.msra.mxu0 %v345
    %837 = vmatprep.subr.bf16.mxu0 0
    %838 = vmatpush1.bf16.msra.mxu0 %v346
    %839 = vmatprep.subr.bf16.mxu0 0
    %840 = vmatpush1.bf16.msra.mxu0 %v347
    %841 = vmatprep.subr.bf16.mxu0 0
    %842 = vmatpush1.bf16.msra.mxu0 %v348
    %843 = vmatprep.subr.bf16.mxu0 0
    %844 = vmatpush1.bf16.msra.mxu0 %v349
    %845 = vmatprep.subr.bf16.mxu0 0
    %846 = vmatpush1.bf16.msra.mxu0 %v350
    %847 = vmatprep.subr.bf16.mxu0 0
    %848 = vmatpush1.bf16.msra.mxu0 0
    %849 = vmatprep.subr.bf16.mxu0 0
    %850 = vmatpush1.bf16.msra.mxu0 0
    %851 = vmatprep.subr.bf16.mxu0 0
    %852 = vmatpush1.bf16.msra.mxu0 0
    %853 = vmatprep.subr.bf16.mxu0 0
    %854 = vmatpush1.bf16.msra.mxu0 0
    %855 = vmatprep.subr.bf16.mxu0 0
    %856 = vmatpush1.bf16.msra.mxu0 0
    %857 = vmatprep.subr.bf16.mxu0 0
    %858 = vmatpush1.bf16.msra.mxu0 0
    %859 = vmatprep.subr.bf16.mxu0 0
    %860 = vmatpush1.bf16.msra.mxu0 0
    %861 = vmatprep.subr.bf16.mxu0 0
    %862 = vmatpush1.bf16.msra.mxu0 0
    %863 = vmatprep.mubr.bf16.mxu0 0
    %864 = vmatmul.mubr.bf16.gmra.mrb[0].mxu0 %v816
    %v865 = vpop.f32.mrb[0].mxu0
    %v866 = vadd.f32 %v829, %v865
    %v867 = vpop.f32.mrb[0].mxu0
    %v868 = vpop.f32.mrb[0].mxu0
    %v869 = vadd.f32 %v829, %v868
    %v870 = vpop.f32.mrb[0].mxu0
    %871 = vmatprep.mubr.bf16.mxu0 0
    %872 = vmatmul.mubr.bf16.gmra.mrb[0].mxu0 %v817
    %v873 = vpop.f32.mrb[0].mxu0
    %v874 = vadd.f32 %v829, %v873
    %v875 = vpop.f32.mrb[0].mxu0
    %v876 = vpop.f32.mrb[0].mxu0
    %v877 = vadd.f32 %v829, %v876
    %v878 = vpop.f32.mrb[0].mxu0
    %879 = vmatprep.mubr.bf16.mxu0 0
    %880 = vmatmul.mubr.bf16.gmra.mrb[0].mxu0 %v818
    %v881 = vpop.f32.mrb[0].mxu0
    %v882 = vadd.f32 %v829, %v881
    %v883 = vpop.f32.mrb[0].mxu0
    %v884 = vpop.f32.mrb[0].mxu0
    %v885 = vadd.f32 %v829, %v884
    %v886 = vpop.f32.mrb[0].mxu0
    %887 = vmatprep.mubr.bf16.mxu0 0
    %888 = vmatmul.mubr.bf16.gmra.mrb[0].mxu0 %v819
    %v889 = vpop.f32.mrb[0].mxu0
    %v890 = vadd.f32 %v829, %v889
    %v891 = vpop.f32.mrb[0].mxu0
    %v892 = vpop.f32.mrb[0].mxu0
    %v893 = vadd.f32 %v829, %v892
    %v894 = vpop.f32.mrb[0].mxu0
    %895 = vmatprep.mubr.bf16.mxu0 0
    %896 = vmatmul.mubr.bf16.gmra.mrb[0].mxu0 %v820
    %v897 = vpop.f32.mrb[0].mxu0
    %v898 = vadd.f32 %v829, %v897
    %v899 = vpop.f32.mrb[0].mxu0
    %v900 = vpop.f32.mrb[0].mxu0
    %v901 = vadd.f32 %v829, %v900
    %v902 = vpop.f32.mrb[0].mxu0
    %903 = vmatprep.mubr.bf16.mxu0 0
    %904 = vmatmul.mubr.bf16.gmra.mrb[0].mxu0 %v821
    %v905 = vpop.f32.mrb[0].mxu0
    %v906 = vadd.f32 %v829, %v905
    %v907 = vpop.f32.mrb[0].mxu0
    %v908 = vpop.f32.mrb[0].mxu0
    %v909 = vadd.f32 %v829, %v908
    %v910 = vpop.f32.mrb[0].mxu0
    %911 = vmatprep.mubr.bf16.mxu0 0
    %912 = vmatmul.mubr.bf16.gmra.mrb[0].mxu0 %v822
    %v913 = vpop.f32.mrb[0].mxu0
    %v914 = vadd.f32 %v829, %v913
    %v915 = vpop.f32.mrb[0].mxu0
    %v916 = vpop.f32.mrb[0].mxu0
    %v917 = vadd.f32 %v829, %v916
    %v918 = vpop.f32.mrb[0].mxu0
    %919 = vmatprep.mubr.bf16.mxu0 0
    %920 = vmatmul.mubr.bf16.gmra.mrb[0].mxu0 %v823
    %v921 = vpop.f32.mrb[0].mxu0
    %v922 = vadd.f32 %v829, %v921
    %v923 = vpop.f32.mrb[0].mxu0
    %v924 = vpop.f32.mrb[0].mxu0
    %v925 = vadd.f32 %v829, %v924
    %v926 = vpop.f32.mrb[0].mxu0
    %927 = vdwg.mxu0
    %v928 = vmax.f32 %v866, 0.0
    %v929 = vmax.f32 %v869, 0.0
    %v930 = vmax.f32 %v874, 0.0
    %v931 = vmax.f32 %v877, 0.0
    %v932 = vmax.f32 %v882, 0.0
    %v933 = vmax.f32 %v885, 0.0
    %v934 = vmax.f32 %v890, 0.0
    %v935 = vmax.f32 %v893, 0.0
    %v936 = vmax.f32 %v898, 0.0
    %v937 = vmax.f32 %v901, 0.0
    %v938 = vmax.f32 %v906, 0.0
    %v939 = vmax.f32 %v909, 0.0
    %v940 = vmax.f32 %v914, 0.0
    %v941 = vmax.f32 %v917, 0.0
    %v942 = vmax.f32 %v922, 0.0
    %v943 = vmax.f32 %v925, 0.0
    %v944 = vpack.c.bf16 %v929, %v928
    %v945 = vpack.c.bf16 %v931, %v930
    %v946 = vpack.c.bf16 %v933, %v932
    %v947 = vpack.c.bf16 %v935, %v934
    %v948 = vpack.c.bf16 %v937, %v936
    %v949 = vpack.c.bf16 %v939, %v938
    %v950 = vpack.c.bf16 %v941, %v940
    %v951 = vpack.c.bf16 %v943, %v942
    %v952 = vld [vmem:[#allocation8] sm:$0xf]
    %v953 = vld [vmem:[#allocation8 + $0x4] sm:$0xf]
    %v954 = vld [vmem:[#allocation8 + $0x8] sm:$0xf]
    %v955 = vld [vmem:[#allocation8 + $0xc] sm:$0xf]
    %v956 = vld [vmem:[#allocation8 + $0x10] sm:$0xf]
    %v957 = vld [vmem:[#allocation8 + $0x14] sm:$0xf]
    %v958 = vld [vmem:[#allocation8 + $0x18] sm:$0xf]
    %v959 = vld [vmem:[#allocation8 + $0x1c] sm:$0xf]
    %v960 = vld [vmem:[#allocation8 + $0x20] sm:$0xf]
    %v961 = vld [vmem:[#allocation8 + $0x24] sm:$0xf]
    %v962 = vld [vmem:[#allocation8 + $0x28] sm:$0xf]
    %v963 = vld [vmem:[#allocation8 + $0x2c] sm:$0xf]
    %v964 = vld [vmem:[#allocation8 + $0x30] sm:$0xf]
    %v965 = vld [vmem:[#allocation8 + $0x34] sm:$0xf]
    %v966 = vld [vmem:[#allocation8 + $0x38] sm:$0xf]
    %v967 = vld [vmem:[#allocation8 + $0x3c] sm:$0xf]
    %v984 = vunpack.c.l.b16 %v952
    %v985 = vunpack.c.l.b16 %v953
    %v986 = vunpack.c.l.b16 %v954
    %v987 = vunpack.c.l.b16 %v955
    %v988 = vunpack.c.l.b16 %v956
    %v989 = vunpack.c.l.b16 %v957
    %v990 = vunpack.c.l.b16 %v958
    %v991 = vunpack.c.l.b16 %v959
    %v992 = vunpack.c.l.b16 %v960
    %v993 = vunpack.c.l.b16 %v961
    %v994 = vunpack.c.l.b16 %v962
    %v995 = vunpack.c.l.b16 %v963
    %v996 = vunpack.c.l.b16 %v964
    %v997 = vunpack.c.l.b16 %v965
    %v998 = vunpack.c.l.b16 %v966
    %v999 = vunpack.c.l.b16 %v967
    %v1000 = vpack.c.b16 %v985, %v984
    %v1001 = vpack.c.b16 %v987, %v986
    %v1002 = vpack.c.b16 %v989, %v988
    %v1003 = vpack.c.b16 %v991, %v990
    %v1004 = vpack.c.b16 %v993, %v992
    %v1005 = vpack.c.b16 %v995, %v994
    %v1006 = vpack.c.b16 %v997, %v996
    %v1007 = vpack.c.b16 %v999, %v998
    %1016 = vmatprep.subr.bf16.mxu0 0
    %1017 = vmatpush1.bf16.msra.mxu0 %v1000
    %1018 = vmatprep.subr.bf16.mxu0 0
    %1019 = vmatpush1.bf16.msra.mxu0 %v1001
    %1020 = vmatprep.subr.bf16.mxu0 0
    %1021 = vmatpush1.bf16.msra.mxu0 %v1002
    %1022 = vmatprep.subr.bf16.mxu0 0
    %1023 = vmatpush1.bf16.msra.mxu0 %v1003
    %1024 = vmatprep.subr.bf16.mxu0 0
    %1025 = vmatpush1.bf16.msra.mxu0 %v1004
    %1026 = vmatprep.subr.bf16.mxu0 0
    %1027 = vmatpush1.bf16.msra.mxu0 %v1005
    %1028 = vmatprep.subr.bf16.mxu0 0
    %1029 = vmatpush1.bf16.msra.mxu0 %v1006
    %1030 = vmatprep.subr.bf16.mxu0 0
    %1031 = vmatpush1.bf16.msra.mxu0 %v1007
    %1032 = vmatprep.subr.bf16.mxu0 0
    %1033 = vmatpush1.bf16.msra.mxu0 0
    %1034 = vmatprep.subr.bf16.mxu0 0
    %1035 = vmatpush1.bf16.msra.mxu0 0
    %1036 = vmatprep.subr.bf16.mxu0 0
    %1037 = vmatpush1.bf16.msra.mxu0 0
    %1038 = vmatprep.subr.bf16.mxu0 0
    %1039 = vmatpush1.bf16.msra.mxu0 0
    %1040 = vmatprep.subr.bf16.mxu0 0
    %1041 = vmatpush1.bf16.msra.mxu0 0
    %1042 = vmatprep.subr.bf16.mxu0 0
    %1043 = vmatpush1.bf16.msra.mxu0 0
    %1044 = vmatprep.subr.bf16.mxu0 0
    %1045 = vmatpush1.bf16.msra.mxu0 0
    %1046 = vmatprep.subr.bf16.mxu0 0
    %1047 = vmatpush1.bf16.msra.mxu0 0
    %1048 = vmatprep.mubr.bf16.mxu0 0
    %1049 = vmatmul.mubr.bf16.gmra.mrb[0].mxu0 %v944
    %v1050 = vpop.f32.mrb[0].mxu0
    %v1051 = vadd.f32 0.0, %v1050
    %v1052 = vpop.f32.mrb[0].mxu0
    %v1053 = vpop.f32.mrb[0].mxu0
    %v1054 = vadd.f32 0.0, %v1053
    %v1055 = vpop.f32.mrb[0].mxu0
    %1056 = vmatprep.mubr.bf16.mxu0 0
    %1057 = vmatmul.mubr.bf16.gmra.mrb[0].mxu0 %v945
    %v1058 = vpop.f32.mrb[0].mxu0
    %v1059 = vadd.f32 0.0, %v1058
    %v1060 = vpop.f32.mrb[0].mxu0
    %v1061 = vpop.f32.mrb[0].mxu0
    %v1062 = vadd.f32 0.0, %v1061
    %v1063 = vpop.f32.mrb[0].mxu0
    %1064 = vmatprep.mubr.bf16.mxu0 0
    %1065 = vmatmul.mubr.bf16.gmra.mrb[0].mxu0 %v946
    %v1066 = vpop.f32.mrb[0].mxu0
    %v1067 = vadd.f32 0.0, %v1066
    %v1068 = vpop.f32.mrb[0].mxu0
    %v1069 = vpop.f32.mrb[0].mxu0
    %v1070 = vadd.f32 0.0, %v1069
    %v1071 = vpop.f32.mrb[0].mxu0
    %1072 = vmatprep.mubr.bf16.mxu0 0
    %1073 = vmatmul.mubr.bf16.gmra.mrb[0].mxu0 %v947
    %v1074 = vpop.f32.mrb[0].mxu0
    %v1075 = vadd.f32 0.0, %v1074
    %v1076 = vpop.f32.mrb[0].mxu0
    %v1077 = vpop.f32.mrb[0].mxu0
    %v1078 = vadd.f32 0.0, %v1077
    %v1079 = vpop.f32.mrb[0].mxu0
    %1080 = vmatprep.mubr.bf16.mxu0 0
    %1081 = vmatmul.mubr.bf16.gmra.mrb[0].mxu0 %v948
    %v1082 = vpop.f32.mrb[0].mxu0
    %v1083 = vadd.f32 0.0, %v1082
    %v1084 = vpop.f32.mrb[0].mxu0
    %v1085 = vpop.f32.mrb[0].mxu0
    %v1086 = vadd.f32 0.0, %v1085
    %v1087 = vpop.f32.mrb[0].mxu0
    %1088 = vmatprep.mubr.bf16.mxu0 0
    %1089 = vmatmul.mubr.bf16.gmra.mrb[0].mxu0 %v949
    %v1090 = vpop.f32.mrb[0].mxu0
    %v1091 = vadd.f32 0.0, %v1090
    %v1092 = vpop.f32.mrb[0].mxu0
    %v1093 = vpop.f32.mrb[0].mxu0
    %v1094 = vadd.f32 0.0, %v1093
    %v1095 = vpop.f32.mrb[0].mxu0
    %1096 = vmatprep.mubr.bf16.mxu0 0
    %1097 = vmatmul.mubr.bf16.gmra.mrb[0].mxu0 %v950
    %v1098 = vpop.f32.mrb[0].mxu0
    %v1099 = vadd.f32 0.0, %v1098
    %v1100 = vpop.f32.mrb[0].mxu0
    %v1101 = vpop.f32.mrb[0].mxu0
    %v1102 = vadd.f32 0.0, %v1101
    %v1103 = vpop.f32.mrb[0].mxu0
    %1104 = vmatprep.mubr.bf16.mxu0 0
    %1105 = vmatmul.mubr.bf16.gmra.mrb[0].mxu0 %v951
    %v1106 = vpop.f32.mrb[0].mxu0
    %v1107 = vadd.f32 0.0, %v1106
    %v1108 = vpop.f32.mrb[0].mxu0
    %v1109 = vpop.f32.mrb[0].mxu0
    %v1110 = vadd.f32 0.0, %v1109
    %v1111 = vpop.f32.mrb[0].mxu0
    %1112 = vdwg.mxu0
    %v1113 = vpack.c.bf16 %v1054, %v1051
    %v1114 = vpack.c.bf16 %v1062, %v1059
    %v1115 = vpack.c.bf16 %v1070, %v1067
    %v1116 = vpack.c.bf16 %v1078, %v1075
    %v1117 = vpack.c.bf16 %v1086, %v1083
    %v1118 = vpack.c.bf16 %v1094, %v1091
    %v1119 = vpack.c.bf16 %v1102, %v1099
    %v1120 = vpack.c.bf16 %v1110, %v1107
    %v1121 = vld [vmem:[%s6] sm:$0x1]
    %1122 = vmatprep.subr.bf16.mxu0 0
    %1123 = vmatpush1.bf16.xpose.msra.mxu0 %v1113
    %1124 = vmatprep.subr.bf16.mxu0 0
    %1125 = vmatpush1.bf16.xpose.msra.mxu0 %v1114
    %1126 = vmatprep.subr.bf16.mxu0 0
    %1127 = vmatpush1.bf16.xpose.msra.mxu0 %v1115
    %1128 = vmatprep.subr.bf16.mxu0 0
    %1129 = vmatpush1.bf16.xpose.msra.mxu0 %v1116
    %1130 = vmatprep.subr.bf16.mxu0 0
    %1131 = vmatpush1.bf16.xpose.msra.mxu0 %v1117
    %1132 = vmatprep.subr.bf16.mxu0 0
    %1133 = vmatpush1.bf16.xpose.msra.mxu0 %v1118
    %1134 = vmatprep.subr.bf16.mxu0 0
    %1135 = vmatpush1.bf16.xpose.msra.mxu0 %v1119
    %1136 = vmatprep.subr.bf16.mxu0 0
    %1137 = vmatpush1.bf16.xpose.msra.mxu0 %v1120
    %1138 = vmatprep.subr.bf16.mxu0 0
    %1139 = vmatpush1.bf16.xpose.msra.mxu0 0
    %1140 = vmatprep.subr.bf16.mxu0 0
    %1141 = vmatpush1.bf16.xpose.msra.mxu0 0
    %1142 = vmatprep.subr.bf16.mxu0 0
    %1143 = vmatpush1.bf16.xpose.msra.mxu0 0
    %1144 = vmatprep.subr.bf16.mxu0 0
    %1145 = vmatpush1.bf16.xpose.msra.mxu0 0
    %1146 = vmatprep.subr.bf16.mxu0 0
    %1147 = vmatpush1.bf16.xpose.msra.mxu0 0
    %1148 = vmatprep.subr.bf16.mxu0 0
    %1149 = vmatpush1.bf16.xpose.msra.mxu0 0
    %1150 = vmatprep.subr.bf16.mxu0 0
    %1151 = vmatpush1.bf16.xpose.msra.mxu0 0
    %1152 = vmatprep.subr.bf16.mxu0 0
    %1153 = vmatpush1.bf16.xpose.msra.mxu0 0
    %1154 = vmatprep.mubr.bf16.mxu0 0
    %1155 = vmatmul.mubr.bf16.gmra.mrb[0].mxu0 %v1121
    %v1156 = vpop.f32.mrb[0].mxu0
    %v1157 = vadd.f32 0.0, %v1156
    %v1158 = vpop.f32.mrb[0].mxu0
    %v1159 = vpop.f32.mrb[0].mxu0
    %v1160 = vpop.f32.mrb[0].mxu0
    %1161 = vdwg.mxu0
    %v1162 = vlaneseq
    %v1163 = vshrl.u32 %v1162, 7
    %v1164 = vsub.s32 0, %v1163
    %v1165 = vrot.slane %v1157, %v1164
    %1167 = vset.pattern.permute.xlu0 32
    %1168 = vperm.xlu0 %1167, %v1051
    %v1169 = vpop.permute.xlu0 %1168
    %1172 = vset.pattern.permute.xlu0 32
    %1173 = vperm.xlu0 %1172, %v1054
    %v1174 = vpop.permute.xlu0 %1173
    %1177 = vset.pattern.permute.xlu0 32
    %1178 = vperm.xlu0 %1177, %v1059
    %v1179 = vpop.permute.xlu0 %1178
    %1182 = vset.pattern.permute.xlu0 32
    %1183 = vperm.xlu0 %1182, %v1062
    %v1184 = vpop.permute.xlu0 %1183
    %1187 = vset.pattern.permute.xlu0 32
    %1188 = vperm.xlu0 %1187, %v1067
    %v1189 = vpop.permute.xlu0 %1188
    %1192 = vset.pattern.permute.xlu0 32
    %1193 = vperm.xlu0 %1192, %v1070
    %v1194 = vpop.permute.xlu0 %1193
    %1197 = vset.pattern.permute.xlu0 32
    %1198 = vperm.xlu0 %1197, %v1075
    %v1199 = vpop.permute.xlu0 %1198
    %1202 = vset.pattern.permute.xlu0 32
    %1203 = vperm.xlu0 %1202, %v1078
    %v1204 = vpop.permute.xlu0 %1203
    %1207 = vset.pattern.permute.xlu0 32
    %1208 = vperm.xlu0 %1207, %v1083
    %v1209 = vpop.permute.xlu0 %1208
    %1212 = vset.pattern.permute.xlu0 32
    %1213 = vperm.xlu0 %1212, %v1086
    %v1214 = vpop.permute.xlu0 %1213
    %1217 = vset.pattern.permute.xlu0 32
    %1218 = vperm.xlu0 %1217, %v1091
    %v1219 = vpop.permute.xlu0 %1218
    %1222 = vset.pattern.permute.xlu0 32
    %1223 = vperm.xlu0 %1222, %v1094
    %v1224 = vpop.permute.xlu0 %1223
    %1227 = vset.pattern.permute.xlu0 32
    %1228 = vperm.xlu0 %1227, %v1099
    %v1229 = vpop.permute.xlu0 %1228
    %1232 = vset.pattern.permute.xlu0 32
    %1233 = vperm.xlu0 %1232, %v1102
    %v1234 = vpop.permute.xlu0 %1233
    %1237 = vset.pattern.permute.xlu0 32
    %1238 = vperm.xlu0 %1237, %v1107
    %v1239 = vpop.permute.xlu0 %1238
    %1242 = vset.pattern.permute.xlu0 32
    %1243 = vperm.xlu0 %1242, %v1110
    %v1244 = vpop.permute.xlu0 %1243
    %v1246 = vadd.f32 %v1165, %v1169
    %v1247 = vadd.f32 %v1165, %v1174
    %v1248 = vadd.f32 %v1165, %v1179
    %v1249 = vadd.f32 %v1165, %v1184
    %v1250 = vadd.f32 %v1165, %v1189
    %v1251 = vadd.f32 %v1165, %v1194
    %v1252 = vadd.f32 %v1165, %v1199
    %v1253 = vadd.f32 %v1165, %v1204
    %v1254 = vadd.f32 %v1165, %v1209
    %v1255 = vadd.f32 %v1165, %v1214
    %v1256 = vadd.f32 %v1165, %v1219
    %v1257 = vadd.f32 %v1165, %v1224
    %v1258 = vadd.f32 %v1165, %v1229
    %v1259 = vadd.f32 %v1165, %v1234
    %v1260 = vadd.f32 %v1165, %v1239
    %v1261 = vadd.f32 %v1165, %v1244
    %v1262 = vmul.f32 %v1246, 0.2
    %v1263 = vmul.f32 %v1247, 0.2
    %v1264 = vmul.f32 %v1248, 0.2
    %v1265 = vmul.f32 %v1249, 0.2
    %v1266 = vmul.f32 %v1250, 0.2
    %v1267 = vmul.f32 %v1251, 0.2
    %v1268 = vmul.f32 %v1252, 0.2
    %v1269 = vmul.f32 %v1253, 0.2
    %v1270 = vmul.f32 %v1254, 0.2
    %v1271 = vmul.f32 %v1255, 0.2
    %v1272 = vmul.f32 %v1256, 0.2
    %v1273 = vmul.f32 %v1257, 0.2
    %v1274 = vmul.f32 %v1258, 0.2
    %v1275 = vmul.f32 %v1259, 0.2
    %v1276 = vmul.f32 %v1260, 0.2
    %v1277 = vmul.f32 %v1261, 0.2
    %v1278 = vmax.f32 %v1246, %v1262
    %v1279 = vmax.f32 %v1247, %v1263
    %v1280 = vmax.f32 %v1248, %v1264
    %v1281 = vmax.f32 %v1249, %v1265
    %v1282 = vmax.f32 %v1250, %v1266
    %v1283 = vmax.f32 %v1251, %v1267
    %v1284 = vmax.f32 %v1252, %v1268
    %v1285 = vmax.f32 %v1253, %v1269
    %v1286 = vmax.f32 %v1254, %v1270
    %v1287 = vmax.f32 %v1255, %v1271
    %v1288 = vmax.f32 %v1256, %v1272
    %v1289 = vmax.f32 %v1257, %v1273
    %v1290 = vmax.f32 %v1258, %v1274
    %v1291 = vmax.f32 %v1259, %v1275
    %v1292 = vmax.f32 %v1260, %v1276
    %v1293 = vmax.f32 %v1261, %v1277
    %v1294 = vsel %vm624, %v1278, -1e+30
    %v1295 = vsel %vm625, %v1279, -1e+30
    %v1296 = vsel %vm626, %v1280, -1e+30
    %v1297 = vsel %vm627, %v1281, -1e+30
    %v1298 = vsel %vm628, %v1282, -1e+30
    %v1299 = vsel %vm629, %v1283, -1e+30
    %v1300 = vsel %vm630, %v1284, -1e+30
    %v1301 = vsel %vm631, %v1285, -1e+30
    %v1302 = vsel %vm632, %v1286, -1e+30
    %v1303 = vsel %vm633, %v1287, -1e+30
    %v1304 = vsel %vm634, %v1288, -1e+30
    %v1305 = vsel %vm635, %v1289, -1e+30
    %v1306 = vsel %vm636, %v1290, -1e+30
    %v1307 = vsel %vm637, %v1291, -1e+30
    %v1308 = vsel %vm638, %v1292, -1e+30
    %v1309 = vsel %vm639, %v1293, -1e+30
    %1310 = vmax.xlane.f32.xlu0 %v1294
    %v1311 = vpop.xlane.xlu0 %1310
    %1312 = vmax.xlane.f32.xlu0 %v1295
    %v1313 = vpop.xlane.xlu0 %1312
    %1314 = vmax.xlane.f32.xlu0 %v1296
    %v1315 = vpop.xlane.xlu0 %1314
    %1316 = vmax.xlane.f32.xlu0 %v1297
    %v1317 = vpop.xlane.xlu0 %1316
    %1318 = vmax.xlane.f32.xlu0 %v1298
    %v1319 = vpop.xlane.xlu0 %1318
    %1320 = vmax.xlane.f32.xlu0 %v1299
    %v1321 = vpop.xlane.xlu0 %1320
    %1322 = vmax.xlane.f32.xlu0 %v1300
    %v1323 = vpop.xlane.xlu0 %1322
    %1324 = vmax.xlane.f32.xlu0 %v1301
    %v1325 = vpop.xlane.xlu0 %1324
    %1326 = vmax.xlane.f32.xlu0 %v1302
    %v1327 = vpop.xlane.xlu0 %1326
    %1328 = vmax.xlane.f32.xlu0 %v1303
    %v1329 = vpop.xlane.xlu0 %1328
    %1330 = vmax.xlane.f32.xlu0 %v1304
    %v1331 = vpop.xlane.xlu0 %1330
    %1332 = vmax.xlane.f32.xlu0 %v1305
    %v1333 = vpop.xlane.xlu0 %1332
    %1334 = vmax.xlane.f32.xlu0 %v1306
    %v1335 = vpop.xlane.xlu0 %1334
    %1336 = vmax.xlane.f32.xlu0 %v1307
    %v1337 = vpop.xlane.xlu0 %1336
    %1338 = vmax.xlane.f32.xlu0 %v1308
    %v1339 = vpop.xlane.xlu0 %1338
    %1340 = vmax.xlane.f32.xlu0 %v1309
    %v1341 = vpop.xlane.xlu0 %1340
    %v1342 = vsub.f32 %v1294, %v1311
    %v1343 = vsub.f32 %v1295, %v1313
    %v1344 = vsub.f32 %v1296, %v1315
    %v1345 = vsub.f32 %v1297, %v1317
    %v1346 = vsub.f32 %v1298, %v1319
    %v1347 = vsub.f32 %v1299, %v1321
    %v1348 = vsub.f32 %v1300, %v1323
    %v1349 = vsub.f32 %v1301, %v1325
    %v1350 = vsub.f32 %v1302, %v1327
    %v1351 = vsub.f32 %v1303, %v1329
    %v1352 = vsub.f32 %v1304, %v1331
    %v1353 = vsub.f32 %v1305, %v1333
    %v1354 = vsub.f32 %v1306, %v1335
    %v1355 = vsub.f32 %v1307, %v1337
    %v1356 = vsub.f32 %v1308, %v1339
    %v1357 = vsub.f32 %v1309, %v1341
    %v1358 = vmul.f32 %v1342, 1.442695
    %v1359 = vpow.pop %v1358
    %v1360 = vmul.f32 %v1343, 1.442695
    %v1361 = vpow.pop %v1360
    %v1362 = vmul.f32 %v1344, 1.442695
    %v1363 = vpow.pop %v1362
    %v1364 = vmul.f32 %v1345, 1.442695
    %v1365 = vpow.pop %v1364
    %v1366 = vmul.f32 %v1346, 1.442695
    %v1367 = vpow.pop %v1366
    %v1368 = vmul.f32 %v1347, 1.442695
    %v1369 = vpow.pop %v1368
    %v1370 = vmul.f32 %v1348, 1.442695
    %v1371 = vpow.pop %v1370
    %v1372 = vmul.f32 %v1349, 1.442695
    %v1373 = vpow.pop %v1372
    %v1374 = vmul.f32 %v1350, 1.442695
    %v1375 = vpow.pop %v1374
    %v1376 = vmul.f32 %v1351, 1.442695
    %v1377 = vpow.pop %v1376
    %v1378 = vmul.f32 %v1352, 1.442695
    %v1379 = vpow.pop %v1378
    %v1380 = vmul.f32 %v1353, 1.442695
    %v1381 = vpow.pop %v1380
    %v1382 = vmul.f32 %v1354, 1.442695
    %v1383 = vpow.pop %v1382
    %v1384 = vmul.f32 %v1355, 1.442695
    %v1385 = vpow.pop %v1384
    %v1386 = vmul.f32 %v1356, 1.442695
    %v1387 = vpow.pop %v1386
    %v1388 = vmul.f32 %v1357, 1.442695
    %v1389 = vpow.pop %v1388
    %1390 = vadd.xlane.f32.xlu0 %v1359
    %v1391 = vpop.xlane.xlu0 %1390
    %1392 = vadd.xlane.f32.xlu0 %v1361
    %v1393 = vpop.xlane.xlu0 %1392
    %1394 = vadd.xlane.f32.xlu0 %v1363
    %v1395 = vpop.xlane.xlu0 %1394
    %1396 = vadd.xlane.f32.xlu0 %v1365
    %v1397 = vpop.xlane.xlu0 %1396
    %1398 = vadd.xlane.f32.xlu0 %v1367
    %v1399 = vpop.xlane.xlu0 %1398
    %1400 = vadd.xlane.f32.xlu0 %v1369
    %v1401 = vpop.xlane.xlu0 %1400
    %1402 = vadd.xlane.f32.xlu0 %v1371
    %v1403 = vpop.xlane.xlu0 %1402
    %1404 = vadd.xlane.f32.xlu0 %v1373
    %v1405 = vpop.xlane.xlu0 %1404
    %1406 = vadd.xlane.f32.xlu0 %v1375
    %v1407 = vpop.xlane.xlu0 %1406
    %1408 = vadd.xlane.f32.xlu0 %v1377
    %v1409 = vpop.xlane.xlu0 %1408
    %1410 = vadd.xlane.f32.xlu0 %v1379
    %v1411 = vpop.xlane.xlu0 %1410
    %1412 = vadd.xlane.f32.xlu0 %v1381
    %v1413 = vpop.xlane.xlu0 %1412
    %1414 = vadd.xlane.f32.xlu0 %v1383
    %v1415 = vpop.xlane.xlu0 %1414
    %1416 = vadd.xlane.f32.xlu0 %v1385
    %v1417 = vpop.xlane.xlu0 %1416
    %1418 = vadd.xlane.f32.xlu0 %v1387
    %v1419 = vpop.xlane.xlu0 %1418
    %1420 = vadd.xlane.f32.xlu0 %v1389
    %v1421 = vpop.xlane.xlu0 %1420
    %v1422 = vmax.f32 %v1391, 1e-30
    %v1423 = vmax.f32 %v1393, 1e-30
    %v1424 = vmax.f32 %v1395, 1e-30
    %v1425 = vmax.f32 %v1397, 1e-30
    %v1426 = vmax.f32 %v1399, 1e-30
    %v1427 = vmax.f32 %v1401, 1e-30
    %v1428 = vmax.f32 %v1403, 1e-30
    %v1429 = vmax.f32 %v1405, 1e-30
    %v1430 = vmax.f32 %v1407, 1e-30
    %v1431 = vmax.f32 %v1409, 1e-30
    %v1432 = vmax.f32 %v1411, 1e-30
    %v1433 = vmax.f32 %v1413, 1e-30
    %v1434 = vmax.f32 %v1415, 1e-30
    %v1435 = vmax.f32 %v1417, 1e-30
    %v1436 = vmax.f32 %v1419, 1e-30
    %v1437 = vmax.f32 %v1421, 1e-30
    %v1438 = vrcp.pop %v1422
    %v1439 = vrcp.pop %v1423
    %v1440 = vrcp.pop %v1424
    %v1441 = vrcp.pop %v1425
    %v1442 = vrcp.pop %v1426
    %v1443 = vrcp.pop %v1427
    %v1444 = vrcp.pop %v1428
    %v1445 = vrcp.pop %v1429
    %v1446 = vrcp.pop %v1430
    %v1447 = vrcp.pop %v1431
    %v1448 = vrcp.pop %v1432
    %v1449 = vrcp.pop %v1433
    %v1450 = vrcp.pop %v1434
    %v1451 = vrcp.pop %v1435
    %v1452 = vrcp.pop %v1436
    %v1453 = vrcp.pop %v1437
    %v1454 = vmul.f32 %v1359, %v1438
    %v1455 = vmul.f32 %v1361, %v1439
    %v1456 = vmul.f32 %v1363, %v1440
    %v1457 = vmul.f32 %v1365, %v1441
    %v1458 = vmul.f32 %v1367, %v1442
    %v1459 = vmul.f32 %v1369, %v1443
    %v1460 = vmul.f32 %v1371, %v1444
    %v1461 = vmul.f32 %v1373, %v1445
    %v1462 = vmul.f32 %v1375, %v1446
    %v1463 = vmul.f32 %v1377, %v1447
    %v1464 = vmul.f32 %v1379, %v1448
    %v1465 = vmul.f32 %v1381, %v1449
    %v1466 = vmul.f32 %v1383, %v1450
    %v1467 = vmul.f32 %v1385, %v1451
    %v1468 = vmul.f32 %v1387, %v1452
    %v1469 = vmul.f32 %v1389, %v1453
    %v1470 = vpack.c.bf16 %v1455, %v1454
    %v1471 = vpack.c.bf16 %v1457, %v1456
    %v1472 = vpack.c.bf16 %v1459, %v1458
    %v1473 = vpack.c.bf16 %v1461, %v1460
    %v1474 = vpack.c.bf16 %v1463, %v1462
    %v1475 = vpack.c.bf16 %v1465, %v1464
    %v1476 = vpack.c.bf16 %v1467, %v1466
    %v1477 = vpack.c.bf16 %v1469, %v1468
    %v1478 = vld [vmem:[%s7] sm:$0x1]
    %v1480 = vlaneseq
    %v1481 = vshrl.u32 %v1480, 7
    %v1482 = vsub.s32 0, %v1481
    %v1483 = vrot.slane %v1478, %v1482
    %1485 = vmatprep.subr.bf16.mxu0 0
    %1486 = vmatpush1.bf16.msra.mxu0 %v1113
    %1487 = vmatprep.subr.bf16.mxu0 0
    %1488 = vmatpush1.bf16.msra.mxu0 %v1114
    %1489 = vmatprep.subr.bf16.mxu0 0
    %1490 = vmatpush1.bf16.msra.mxu0 %v1115
    %1491 = vmatprep.subr.bf16.mxu0 0
    %1492 = vmatpush1.bf16.msra.mxu0 %v1116
    %1493 = vmatprep.subr.bf16.mxu0 0
    %1494 = vmatpush1.bf16.msra.mxu0 %v1117
    %1495 = vmatprep.subr.bf16.mxu0 0
    %1496 = vmatpush1.bf16.msra.mxu0 %v1118
    %1497 = vmatprep.subr.bf16.mxu0 0
    %1498 = vmatpush1.bf16.msra.mxu0 %v1119
    %1499 = vmatprep.subr.bf16.mxu0 0
    %1500 = vmatpush1.bf16.msra.mxu0 %v1120
    %1501 = vmatprep.subr.bf16.mxu0 0
    %1502 = vmatpush1.bf16.msra.mxu0 0
    %1503 = vmatprep.subr.bf16.mxu0 0
    %1504 = vmatpush1.bf16.msra.mxu0 0
    %1505 = vmatprep.subr.bf16.mxu0 0
    %1506 = vmatpush1.bf16.msra.mxu0 0
    %1507 = vmatprep.subr.bf16.mxu0 0
    %1508 = vmatpush1.bf16.msra.mxu0 0
    %1509 = vmatprep.subr.bf16.mxu0 0
    %1510 = vmatpush1.bf16.msra.mxu0 0
    %1511 = vmatprep.subr.bf16.mxu0 0
    %1512 = vmatpush1.bf16.msra.mxu0 0
    %1513 = vmatprep.subr.bf16.mxu0 0
    %1514 = vmatpush1.bf16.msra.mxu0 0
    %1515 = vmatprep.subr.bf16.mxu0 0
    %1516 = vmatpush1.bf16.msra.mxu0 0
    %1517 = vmatprep.mubr.bf16.mxu0 0
    %1518 = vmatmul.mubr.bf16.gmra.mrb[0].mxu0 %v1470
    %v1519 = vpop.f32.mrb[0].mxu0
    %v1520 = vadd.f32 %v1483, %v1519
    %v1521 = vpop.f32.mrb[0].mxu0
    %v1522 = vpop.f32.mrb[0].mxu0
    %v1523 = vadd.f32 %v1483, %v1522
    %v1524 = vpop.f32.mrb[0].mxu0
    %1525 = vmatprep.mubr.bf16.mxu0 0
    %1526 = vmatmul.mubr.bf16.gmra.mrb[0].mxu0 %v1471
    %v1527 = vpop.f32.mrb[0].mxu0
    %v1528 = vadd.f32 %v1483, %v1527
    %v1529 = vpop.f32.mrb[0].mxu0
    %v1530 = vpop.f32.mrb[0].mxu0
    %v1531 = vadd.f32 %v1483, %v1530
    %v1532 = vpop.f32.mrb[0].mxu0
    %1533 = vmatprep.mubr.bf16.mxu0 0
    %1534 = vmatmul.mubr.bf16.gmra.mrb[0].mxu0 %v1472
    %v1535 = vpop.f32.mrb[0].mxu0
    %v1536 = vadd.f32 %v1483, %v1535
    %v1537 = vpop.f32.mrb[0].mxu0
    %v1538 = vpop.f32.mrb[0].mxu0
    %v1539 = vadd.f32 %v1483, %v1538
    %v1540 = vpop.f32.mrb[0].mxu0
    %1541 = vmatprep.mubr.bf16.mxu0 0
    %1542 = vmatmul.mubr.bf16.gmra.mrb[0].mxu0 %v1473
    %v1543 = vpop.f32.mrb[0].mxu0
    %v1544 = vadd.f32 %v1483, %v1543
    %v1545 = vpop.f32.mrb[0].mxu0
    %v1546 = vpop.f32.mrb[0].mxu0
    %v1547 = vadd.f32 %v1483, %v1546
    %v1548 = vpop.f32.mrb[0].mxu0
    %1549 = vmatprep.mubr.bf16.mxu0 0
    %1550 = vmatmul.mubr.bf16.gmra.mrb[0].mxu0 %v1474
    %v1551 = vpop.f32.mrb[0].mxu0
    %v1552 = vadd.f32 %v1483, %v1551
    %v1553 = vpop.f32.mrb[0].mxu0
    %v1554 = vpop.f32.mrb[0].mxu0
    %v1555 = vadd.f32 %v1483, %v1554
    %v1556 = vpop.f32.mrb[0].mxu0
    %1557 = vmatprep.mubr.bf16.mxu0 0
    %1558 = vmatmul.mubr.bf16.gmra.mrb[0].mxu0 %v1475
    %v1559 = vpop.f32.mrb[0].mxu0
    %v1560 = vadd.f32 %v1483, %v1559
    %v1561 = vpop.f32.mrb[0].mxu0
    %v1562 = vpop.f32.mrb[0].mxu0
    %v1563 = vadd.f32 %v1483, %v1562
    %v1564 = vpop.f32.mrb[0].mxu0
    %1565 = vmatprep.mubr.bf16.mxu0 0
    %1566 = vmatmul.mubr.bf16.gmra.mrb[0].mxu0 %v1476
    %v1567 = vpop.f32.mrb[0].mxu0
    %v1568 = vadd.f32 %v1483, %v1567
    %v1569 = vpop.f32.mrb[0].mxu0
    %v1570 = vpop.f32.mrb[0].mxu0
    %v1571 = vadd.f32 %v1483, %v1570
    %v1572 = vpop.f32.mrb[0].mxu0
    %1573 = vmatprep.mubr.bf16.mxu0 0
    %1574 = vmatmul.mubr.bf16.gmra.mrb[0].mxu0 %v1477
    %v1575 = vpop.f32.mrb[0].mxu0
    %v1576 = vadd.f32 %v1483, %v1575
    %v1577 = vpop.f32.mrb[0].mxu0
    %v1578 = vpop.f32.mrb[0].mxu0
    %v1579 = vadd.f32 %v1483, %v1578
    %v1580 = vpop.f32.mrb[0].mxu0
    %1581 = vdwg.mxu0
    %v1582 = vmax.f32 %v1520, 0.0
    %v1583 = vmax.f32 %v1523, 0.0
    %v1584 = vmax.f32 %v1528, 0.0
    %v1585 = vmax.f32 %v1531, 0.0
    %v1586 = vmax.f32 %v1536, 0.0
    %v1587 = vmax.f32 %v1539, 0.0
    %v1588 = vmax.f32 %v1544, 0.0
    %v1589 = vmax.f32 %v1547, 0.0
    %v1590 = vmax.f32 %v1552, 0.0
    %v1591 = vmax.f32 %v1555, 0.0
    %v1592 = vmax.f32 %v1560, 0.0
    %v1593 = vmax.f32 %v1563, 0.0
    %v1594 = vmax.f32 %v1568, 0.0
    %v1595 = vmax.f32 %v1571, 0.0
    %v1596 = vmax.f32 %v1576, 0.0
    %v1597 = vmax.f32 %v1579, 0.0
    %v1598 = vpack.c.bf16 %v1583, %v1582
    %v1599 = vpack.c.bf16 %v1585, %v1584
    %v1600 = vpack.c.bf16 %v1587, %v1586
    %v1601 = vpack.c.bf16 %v1589, %v1588
    %v1602 = vpack.c.bf16 %v1591, %v1590
    %v1603 = vpack.c.bf16 %v1593, %v1592
    %v1604 = vpack.c.bf16 %v1595, %v1594
    %v1605 = vpack.c.bf16 %v1597, %v1596
    %v1606 = vld [vmem:[#allocation10] sm:$0xf]
    %v1607 = vld [vmem:[#allocation10 + $0x4] sm:$0xf]
    %v1608 = vld [vmem:[#allocation10 + $0x8] sm:$0xf]
    %v1609 = vld [vmem:[#allocation10 + $0xc] sm:$0xf]
    %v1610 = vld [vmem:[#allocation10 + $0x10] sm:$0xf]
    %v1611 = vld [vmem:[#allocation10 + $0x14] sm:$0xf]
    %v1612 = vld [vmem:[#allocation10 + $0x18] sm:$0xf]
    %v1613 = vld [vmem:[#allocation10 + $0x1c] sm:$0xf]
    %v1614 = vld [vmem:[#allocation10 + $0x20] sm:$0xf]
    %v1615 = vld [vmem:[#allocation10 + $0x24] sm:$0xf]
    %v1616 = vld [vmem:[#allocation10 + $0x28] sm:$0xf]
    %v1617 = vld [vmem:[#allocation10 + $0x2c] sm:$0xf]
    %v1618 = vld [vmem:[#allocation10 + $0x30] sm:$0xf]
    %v1619 = vld [vmem:[#allocation10 + $0x34] sm:$0xf]
    %v1620 = vld [vmem:[#allocation10 + $0x38] sm:$0xf]
    %v1621 = vld [vmem:[#allocation10 + $0x3c] sm:$0xf]
    %v1638 = vunpack.c.l.b16 %v1606
    %v1639 = vunpack.c.l.b16 %v1607
    %v1640 = vunpack.c.l.b16 %v1608
    %v1641 = vunpack.c.l.b16 %v1609
    %v1642 = vunpack.c.l.b16 %v1610
    %v1643 = vunpack.c.l.b16 %v1611
    %v1644 = vunpack.c.l.b16 %v1612
    %v1645 = vunpack.c.l.b16 %v1613
    %v1646 = vunpack.c.l.b16 %v1614
    %v1647 = vunpack.c.l.b16 %v1615
    %v1648 = vunpack.c.l.b16 %v1616
    %v1649 = vunpack.c.l.b16 %v1617
    %v1650 = vunpack.c.l.b16 %v1618
    %v1651 = vunpack.c.l.b16 %v1619
    %v1652 = vunpack.c.l.b16 %v1620
    %v1653 = vunpack.c.l.b16 %v1621
    %v1654 = vpack.c.b16 %v1639, %v1638
    %v1655 = vpack.c.b16 %v1641, %v1640
    %v1656 = vpack.c.b16 %v1643, %v1642
    %v1657 = vpack.c.b16 %v1645, %v1644
    %v1658 = vpack.c.b16 %v1647, %v1646
    %v1659 = vpack.c.b16 %v1649, %v1648
    %v1660 = vpack.c.b16 %v1651, %v1650
    %v1661 = vpack.c.b16 %v1653, %v1652
    %1670 = vmatprep.subr.bf16.mxu0 0
    %1671 = vmatpush1.bf16.msra.mxu0 %v1654
    %1672 = vmatprep.subr.bf16.mxu0 0
    %1673 = vmatpush1.bf16.msra.mxu0 %v1655
    %1674 = vmatprep.subr.bf16.mxu0 0
    %1675 = vmatpush1.bf16.msra.mxu0 %v1656
    %1676 = vmatprep.subr.bf16.mxu0 0
    %1677 = vmatpush1.bf16.msra.mxu0 %v1657
    %1678 = vmatprep.subr.bf16.mxu0 0
    %1679 = vmatpush1.bf16.msra.mxu0 %v1658
    %1680 = vmatprep.subr.bf16.mxu0 0
    %1681 = vmatpush1.bf16.msra.mxu0 %v1659
    %1682 = vmatprep.subr.bf16.mxu0 0
    %1683 = vmatpush1.bf16.msra.mxu0 %v1660
    %1684 = vmatprep.subr.bf16.mxu0 0
    %1685 = vmatpush1.bf16.msra.mxu0 %v1661
    %1686 = vmatprep.subr.bf16.mxu0 0
    %1687 = vmatpush1.bf16.msra.mxu0 0
    %1688 = vmatprep.subr.bf16.mxu0 0
    %1689 = vmatpush1.bf16.msra.mxu0 0
    %1690 = vmatprep.subr.bf16.mxu0 0
    %1691 = vmatpush1.bf16.msra.mxu0 0
    %1692 = vmatprep.subr.bf16.mxu0 0
    %1693 = vmatpush1.bf16.msra.mxu0 0
    %1694 = vmatprep.subr.bf16.mxu0 0
    %1695 = vmatpush1.bf16.msra.mxu0 0
    %1696 = vmatprep.subr.bf16.mxu0 0
    %1697 = vmatpush1.bf16.msra.mxu0 0
    %1698 = vmatprep.subr.bf16.mxu0 0
    %1699 = vmatpush1.bf16.msra.mxu0 0
    %1700 = vmatprep.subr.bf16.mxu0 0
    %1701 = vmatpush1.bf16.msra.mxu0 0
    %1702 = vmatprep.mubr.bf16.mxu0 0
    %1703 = vmatmul.mubr.bf16.gmra.mrb[0].mxu0 %v1598
    %v1704 = vpop.f32.mrb[0].mxu0
    %v1705 = vadd.f32 0.0, %v1704
    %v1706 = vpop.f32.mrb[0].mxu0
    %v1707 = vpop.f32.mrb[0].mxu0
    %v1708 = vadd.f32 0.0, %v1707
    %v1709 = vpop.f32.mrb[0].mxu0
    %1710 = vmatprep.mubr.bf16.mxu0 0
    %1711 = vmatmul.mubr.bf16.gmra.mrb[0].mxu0 %v1599
    %v1712 = vpop.f32.mrb[0].mxu0
    %v1713 = vadd.f32 0.0, %v1712
    %v1714 = vpop.f32.mrb[0].mxu0
    %v1715 = vpop.f32.mrb[0].mxu0
    %v1716 = vadd.f32 0.0, %v1715
    %v1717 = vpop.f32.mrb[0].mxu0
    %1718 = vmatprep.mubr.bf16.mxu0 0
    %1719 = vmatmul.mubr.bf16.gmra.mrb[0].mxu0 %v1600
    %v1720 = vpop.f32.mrb[0].mxu0
    %v1721 = vadd.f32 0.0, %v1720
    %v1722 = vpop.f32.mrb[0].mxu0
    %v1723 = vpop.f32.mrb[0].mxu0
    %v1724 = vadd.f32 0.0, %v1723
    %v1725 = vpop.f32.mrb[0].mxu0
    %1726 = vmatprep.mubr.bf16.mxu0 0
    %1727 = vmatmul.mubr.bf16.gmra.mrb[0].mxu0 %v1601
    %v1728 = vpop.f32.mrb[0].mxu0
    %v1729 = vadd.f32 0.0, %v1728
    %v1730 = vpop.f32.mrb[0].mxu0
    %v1731 = vpop.f32.mrb[0].mxu0
    %v1732 = vadd.f32 0.0, %v1731
    %v1733 = vpop.f32.mrb[0].mxu0
    %1734 = vmatprep.mubr.bf16.mxu0 0
    %1735 = vmatmul.mubr.bf16.gmra.mrb[0].mxu0 %v1602
    %v1736 = vpop.f32.mrb[0].mxu0
    %v1737 = vadd.f32 0.0, %v1736
    %v1738 = vpop.f32.mrb[0].mxu0
    %v1739 = vpop.f32.mrb[0].mxu0
    %v1740 = vadd.f32 0.0, %v1739
    %v1741 = vpop.f32.mrb[0].mxu0
    %1742 = vmatprep.mubr.bf16.mxu0 0
    %1743 = vmatmul.mubr.bf16.gmra.mrb[0].mxu0 %v1603
    %v1744 = vpop.f32.mrb[0].mxu0
    %v1745 = vadd.f32 0.0, %v1744
    %v1746 = vpop.f32.mrb[0].mxu0
    %v1747 = vpop.f32.mrb[0].mxu0
    %v1748 = vadd.f32 0.0, %v1747
    %v1749 = vpop.f32.mrb[0].mxu0
    %1750 = vmatprep.mubr.bf16.mxu0 0
    %1751 = vmatmul.mubr.bf16.gmra.mrb[0].mxu0 %v1604
    %v1752 = vpop.f32.mrb[0].mxu0
    %v1753 = vadd.f32 0.0, %v1752
    %v1754 = vpop.f32.mrb[0].mxu0
    %v1755 = vpop.f32.mrb[0].mxu0
    %v1756 = vadd.f32 0.0, %v1755
    %v1757 = vpop.f32.mrb[0].mxu0
    %1758 = vmatprep.mubr.bf16.mxu0 0
    %1759 = vmatmul.mubr.bf16.gmra.mrb[0].mxu0 %v1605
    %v1760 = vpop.f32.mrb[0].mxu0
    %v1761 = vadd.f32 0.0, %v1760
    %v1762 = vpop.f32.mrb[0].mxu0
    %v1763 = vpop.f32.mrb[0].mxu0
    %v1764 = vadd.f32 0.0, %v1763
    %v1765 = vpop.f32.mrb[0].mxu0
    %1766 = vdwg.mxu0
    %v1767 = vpack.c.bf16 %v1708, %v1705
    %v1768 = vpack.c.bf16 %v1716, %v1713
    %v1769 = vpack.c.bf16 %v1724, %v1721
    %v1770 = vpack.c.bf16 %v1732, %v1729
    %v1771 = vpack.c.bf16 %v1740, %v1737
    %v1772 = vpack.c.bf16 %v1748, %v1745
    %v1773 = vpack.c.bf16 %v1756, %v1753
    %v1774 = vpack.c.bf16 %v1764, %v1761
    %v1775 = vld [vmem:[%s9] sm:$0x1]
    %1776 = vmatprep.subr.bf16.mxu0 0
    %1777 = vmatpush1.bf16.xpose.msra.mxu0 %v1767
    %1778 = vmatprep.subr.bf16.mxu0 0
    %1779 = vmatpush1.bf16.xpose.msra.mxu0 %v1768
    %1780 = vmatprep.subr.bf16.mxu0 0
    %1781 = vmatpush1.bf16.xpose.msra.mxu0 %v1769
    %1782 = vmatprep.subr.bf16.mxu0 0
    %1783 = vmatpush1.bf16.xpose.msra.mxu0 %v1770
    %1784 = vmatprep.subr.bf16.mxu0 0
    %1785 = vmatpush1.bf16.xpose.msra.mxu0 %v1771
    %1786 = vmatprep.subr.bf16.mxu0 0
    %1787 = vmatpush1.bf16.xpose.msra.mxu0 %v1772
    %1788 = vmatprep.subr.bf16.mxu0 0
    %1789 = vmatpush1.bf16.xpose.msra.mxu0 %v1773
    %1790 = vmatprep.subr.bf16.mxu0 0
    %1791 = vmatpush1.bf16.xpose.msra.mxu0 %v1774
    %1792 = vmatprep.subr.bf16.mxu0 0
    %1793 = vmatpush1.bf16.xpose.msra.mxu0 0
    %1794 = vmatprep.subr.bf16.mxu0 0
    %1795 = vmatpush1.bf16.xpose.msra.mxu0 0
    %1796 = vmatprep.subr.bf16.mxu0 0
    %1797 = vmatpush1.bf16.xpose.msra.mxu0 0
    %1798 = vmatprep.subr.bf16.mxu0 0
    %1799 = vmatpush1.bf16.xpose.msra.mxu0 0
    %1800 = vmatprep.subr.bf16.mxu0 0
    %1801 = vmatpush1.bf16.xpose.msra.mxu0 0
    %1802 = vmatprep.subr.bf16.mxu0 0
    %1803 = vmatpush1.bf16.xpose.msra.mxu0 0
    %1804 = vmatprep.subr.bf16.mxu0 0
    %1805 = vmatpush1.bf16.xpose.msra.mxu0 0
    %1806 = vmatprep.subr.bf16.mxu0 0
    %1807 = vmatpush1.bf16.xpose.msra.mxu0 0
    %1808 = vmatprep.mubr.bf16.mxu0 0
    %1809 = vmatmul.mubr.bf16.gmra.mrb[0].mxu0 %v1775
    %v1810 = vpop.f32.mrb[0].mxu0
    %v1811 = vadd.f32 0.0, %v1810
    %v1812 = vpop.f32.mrb[0].mxu0
    %v1813 = vpop.f32.mrb[0].mxu0
    %v1814 = vpop.f32.mrb[0].mxu0
    %1815 = vdwg.mxu0
    %v1816 = vlaneseq
    %v1817 = vshrl.u32 %v1816, 7
    %v1818 = vsub.s32 0, %v1817
    %v1819 = vrot.slane %v1811, %v1818
    %1821 = vset.pattern.permute.xlu0 8
    %1822 = vperm.xlu0 %1821, %v1705
    %v1823 = vpop.permute.xlu0 %1822
    %1826 = vset.pattern.permute.xlu0 8
    %1827 = vperm.xlu0 %1826, %v1708
    %v1828 = vpop.permute.xlu0 %1827
    %1831 = vset.pattern.permute.xlu0 8
    %1832 = vperm.xlu0 %1831, %v1713
    %v1833 = vpop.permute.xlu0 %1832
    %1836 = vset.pattern.permute.xlu0 8
    %1837 = vperm.xlu0 %1836, %v1716
    %v1838 = vpop.permute.xlu0 %1837
    %1841 = vset.pattern.permute.xlu0 8
    %1842 = vperm.xlu0 %1841, %v1721
    %v1843 = vpop.permute.xlu0 %1842
    %1846 = vset.pattern.permute.xlu0 8
    %1847 = vperm.xlu0 %1846, %v1724
    %v1848 = vpop.permute.xlu0 %1847
    %1851 = vset.pattern.permute.xlu0 8
    %1852 = vperm.xlu0 %1851, %v1729
    %v1853 = vpop.permute.xlu0 %1852
    %1856 = vset.pattern.permute.xlu0 8
    %1857 = vperm.xlu0 %1856, %v1732
    %v1858 = vpop.permute.xlu0 %1857
    %1861 = vset.pattern.permute.xlu0 8
    %1862 = vperm.xlu0 %1861, %v1737
    %v1863 = vpop.permute.xlu0 %1862
    %1866 = vset.pattern.permute.xlu0 8
    %1867 = vperm.xlu0 %1866, %v1740
    %v1868 = vpop.permute.xlu0 %1867
    %1871 = vset.pattern.permute.xlu0 8
    %1872 = vperm.xlu0 %1871, %v1745
    %v1873 = vpop.permute.xlu0 %1872
    %1876 = vset.pattern.permute.xlu0 8
    %1877 = vperm.xlu0 %1876, %v1748
    %v1878 = vpop.permute.xlu0 %1877
    %1881 = vset.pattern.permute.xlu0 8
    %1882 = vperm.xlu0 %1881, %v1753
    %v1883 = vpop.permute.xlu0 %1882
    %1886 = vset.pattern.permute.xlu0 8
    %1887 = vperm.xlu0 %1886, %v1756
    %v1888 = vpop.permute.xlu0 %1887
    %1891 = vset.pattern.permute.xlu0 8
    %1892 = vperm.xlu0 %1891, %v1761
    %v1893 = vpop.permute.xlu0 %1892
    %1896 = vset.pattern.permute.xlu0 8
    %1897 = vperm.xlu0 %1896, %v1764
    %v1898 = vpop.permute.xlu0 %1897
    %v1900 = vadd.f32 %v1819, %v1823
    %v1901 = vadd.f32 %v1819, %v1828
    %v1902 = vadd.f32 %v1819, %v1833
    %v1903 = vadd.f32 %v1819, %v1838
    %v1904 = vadd.f32 %v1819, %v1843
    %v1905 = vadd.f32 %v1819, %v1848
    %v1906 = vadd.f32 %v1819, %v1853
    %v1907 = vadd.f32 %v1819, %v1858
    %v1908 = vadd.f32 %v1819, %v1863
    %v1909 = vadd.f32 %v1819, %v1868
    %v1910 = vadd.f32 %v1819, %v1873
    %v1911 = vadd.f32 %v1819, %v1878
    %v1912 = vadd.f32 %v1819, %v1883
    %v1913 = vadd.f32 %v1819, %v1888
    %v1914 = vadd.f32 %v1819, %v1893
    %v1915 = vadd.f32 %v1819, %v1898
    %v1916 = vmul.f32 %v1900, 0.2
    %v1917 = vmul.f32 %v1901, 0.2
    %v1918 = vmul.f32 %v1902, 0.2
    %v1919 = vmul.f32 %v1903, 0.2
    %v1920 = vmul.f32 %v1904, 0.2
    %v1921 = vmul.f32 %v1905, 0.2
    %v1922 = vmul.f32 %v1906, 0.2
    %v1923 = vmul.f32 %v1907, 0.2
    %v1924 = vmul.f32 %v1908, 0.2
    %v1925 = vmul.f32 %v1909, 0.2
    %v1926 = vmul.f32 %v1910, 0.2
    %v1927 = vmul.f32 %v1911, 0.2
    %v1928 = vmul.f32 %v1912, 0.2
    %v1929 = vmul.f32 %v1913, 0.2
    %v1930 = vmul.f32 %v1914, 0.2
    %v1931 = vmul.f32 %v1915, 0.2
    %v1932 = vmax.f32 %v1900, %v1916
    %v1933 = vmax.f32 %v1901, %v1917
    %v1934 = vmax.f32 %v1902, %v1918
    %v1935 = vmax.f32 %v1903, %v1919
    %v1936 = vmax.f32 %v1904, %v1920
    %v1937 = vmax.f32 %v1905, %v1921
    %v1938 = vmax.f32 %v1906, %v1922
    %v1939 = vmax.f32 %v1907, %v1923
    %v1940 = vmax.f32 %v1908, %v1924
    %v1941 = vmax.f32 %v1909, %v1925
    %v1942 = vmax.f32 %v1910, %v1926
    %v1943 = vmax.f32 %v1911, %v1927
    %v1944 = vmax.f32 %v1912, %v1928
    %v1945 = vmax.f32 %v1913, %v1929
    %v1946 = vmax.f32 %v1914, %v1930
    %v1947 = vmax.f32 %v1915, %v1931
    %v1948 = vsel %vm624, %v1932, -1e+30
    %v1949 = vsel %vm625, %v1933, -1e+30
    %v1950 = vsel %vm626, %v1934, -1e+30
    %v1951 = vsel %vm627, %v1935, -1e+30
    %v1952 = vsel %vm628, %v1936, -1e+30
    %v1953 = vsel %vm629, %v1937, -1e+30
    %v1954 = vsel %vm630, %v1938, -1e+30
    %v1955 = vsel %vm631, %v1939, -1e+30
    %v1956 = vsel %vm632, %v1940, -1e+30
    %v1957 = vsel %vm633, %v1941, -1e+30
    %v1958 = vsel %vm634, %v1942, -1e+30
    %v1959 = vsel %vm635, %v1943, -1e+30
    %v1960 = vsel %vm636, %v1944, -1e+30
    %v1961 = vsel %vm637, %v1945, -1e+30
    %v1962 = vsel %vm638, %v1946, -1e+30
    %v1963 = vsel %vm639, %v1947, -1e+30
    %1964 = vmax.xlane.f32.xlu0 %v1948
    %v1965 = vpop.xlane.xlu0 %1964
    %1966 = vmax.xlane.f32.xlu0 %v1949
    %v1967 = vpop.xlane.xlu0 %1966
    %1968 = vmax.xlane.f32.xlu0 %v1950
    %v1969 = vpop.xlane.xlu0 %1968
    %1970 = vmax.xlane.f32.xlu0 %v1951
    %v1971 = vpop.xlane.xlu0 %1970
    %1972 = vmax.xlane.f32.xlu0 %v1952
    %v1973 = vpop.xlane.xlu0 %1972
    %1974 = vmax.xlane.f32.xlu0 %v1953
    %v1975 = vpop.xlane.xlu0 %1974
    %1976 = vmax.xlane.f32.xlu0 %v1954
    %v1977 = vpop.xlane.xlu0 %1976
    %1978 = vmax.xlane.f32.xlu0 %v1955
    %v1979 = vpop.xlane.xlu0 %1978
    %1980 = vmax.xlane.f32.xlu0 %v1956
    %v1981 = vpop.xlane.xlu0 %1980
    %1982 = vmax.xlane.f32.xlu0 %v1957
    %v1983 = vpop.xlane.xlu0 %1982
    %1984 = vmax.xlane.f32.xlu0 %v1958
    %v1985 = vpop.xlane.xlu0 %1984
    %1986 = vmax.xlane.f32.xlu0 %v1959
    %v1987 = vpop.xlane.xlu0 %1986
    %1988 = vmax.xlane.f32.xlu0 %v1960
    %v1989 = vpop.xlane.xlu0 %1988
    %1990 = vmax.xlane.f32.xlu0 %v1961
    %v1991 = vpop.xlane.xlu0 %1990
    %1992 = vmax.xlane.f32.xlu0 %v1962
    %v1993 = vpop.xlane.xlu0 %1992
    %1994 = vmax.xlane.f32.xlu0 %v1963
    %v1995 = vpop.xlane.xlu0 %1994
    %v1996 = vsub.f32 %v1948, %v1965
    %v1997 = vsub.f32 %v1949, %v1967
    %v1998 = vsub.f32 %v1950, %v1969
    %v1999 = vsub.f32 %v1951, %v1971
    %v2000 = vsub.f32 %v1952, %v1973
    %v2001 = vsub.f32 %v1953, %v1975
    %v2002 = vsub.f32 %v1954, %v1977
    %v2003 = vsub.f32 %v1955, %v1979
    %v2004 = vsub.f32 %v1956, %v1981
    %v2005 = vsub.f32 %v1957, %v1983
    %v2006 = vsub.f32 %v1958, %v1985
    %v2007 = vsub.f32 %v1959, %v1987
    %v2008 = vsub.f32 %v1960, %v1989
    %v2009 = vsub.f32 %v1961, %v1991
    %v2010 = vsub.f32 %v1962, %v1993
    %v2011 = vsub.f32 %v1963, %v1995
    %v2012 = vmul.f32 %v1996, 1.442695
    %v2013 = vpow.pop %v2012
    %v2014 = vmul.f32 %v1997, 1.442695
    %v2015 = vpow.pop %v2014
    %v2016 = vmul.f32 %v1998, 1.442695
    %v2017 = vpow.pop %v2016
    %v2018 = vmul.f32 %v1999, 1.442695
    %v2019 = vpow.pop %v2018
    %v2020 = vmul.f32 %v2000, 1.442695
    %v2021 = vpow.pop %v2020
    %v2022 = vmul.f32 %v2001, 1.442695
    %v2023 = vpow.pop %v2022
    %v2024 = vmul.f32 %v2002, 1.442695
    %v2025 = vpow.pop %v2024
    %v2026 = vmul.f32 %v2003, 1.442695
    %v2027 = vpow.pop %v2026
    %v2028 = vmul.f32 %v2004, 1.442695
    %v2029 = vpow.pop %v2028
    %v2030 = vmul.f32 %v2005, 1.442695
    %v2031 = vpow.pop %v2030
    %v2032 = vmul.f32 %v2006, 1.442695
    %v2033 = vpow.pop %v2032
    %v2034 = vmul.f32 %v2007, 1.442695
    %v2035 = vpow.pop %v2034
    %v2036 = vmul.f32 %v2008, 1.442695
    %v2037 = vpow.pop %v2036
    %v2038 = vmul.f32 %v2009, 1.442695
    %v2039 = vpow.pop %v2038
    %v2040 = vmul.f32 %v2010, 1.442695
    %v2041 = vpow.pop %v2040
    %v2042 = vmul.f32 %v2011, 1.442695
    %v2043 = vpow.pop %v2042
    %2044 = vadd.xlane.f32.xlu0 %v2013
    %v2045 = vpop.xlane.xlu0 %2044
    %2046 = vadd.xlane.f32.xlu0 %v2015
    %v2047 = vpop.xlane.xlu0 %2046
    %2048 = vadd.xlane.f32.xlu0 %v2017
    %v2049 = vpop.xlane.xlu0 %2048
    %2050 = vadd.xlane.f32.xlu0 %v2019
    %v2051 = vpop.xlane.xlu0 %2050
    %2052 = vadd.xlane.f32.xlu0 %v2021
    %v2053 = vpop.xlane.xlu0 %2052
    %2054 = vadd.xlane.f32.xlu0 %v2023
    %v2055 = vpop.xlane.xlu0 %2054
    %2056 = vadd.xlane.f32.xlu0 %v2025
    %v2057 = vpop.xlane.xlu0 %2056
    %2058 = vadd.xlane.f32.xlu0 %v2027
    %v2059 = vpop.xlane.xlu0 %2058
    %2060 = vadd.xlane.f32.xlu0 %v2029
    %v2061 = vpop.xlane.xlu0 %2060
    %2062 = vadd.xlane.f32.xlu0 %v2031
    %v2063 = vpop.xlane.xlu0 %2062
    %2064 = vadd.xlane.f32.xlu0 %v2033
    %v2065 = vpop.xlane.xlu0 %2064
    %2066 = vadd.xlane.f32.xlu0 %v2035
    %v2067 = vpop.xlane.xlu0 %2066
    %2068 = vadd.xlane.f32.xlu0 %v2037
    %v2069 = vpop.xlane.xlu0 %2068
    %2070 = vadd.xlane.f32.xlu0 %v2039
    %v2071 = vpop.xlane.xlu0 %2070
    %2072 = vadd.xlane.f32.xlu0 %v2041
    %v2073 = vpop.xlane.xlu0 %2072
    %2074 = vadd.xlane.f32.xlu0 %v2043
    %v2075 = vpop.xlane.xlu0 %2074
    %v2076 = vmax.f32 %v2045, 1e-30
    %v2077 = vmax.f32 %v2047, 1e-30
    %v2078 = vmax.f32 %v2049, 1e-30
    %v2079 = vmax.f32 %v2051, 1e-30
    %v2080 = vmax.f32 %v2053, 1e-30
    %v2081 = vmax.f32 %v2055, 1e-30
    %v2082 = vmax.f32 %v2057, 1e-30
    %v2083 = vmax.f32 %v2059, 1e-30
    %v2084 = vmax.f32 %v2061, 1e-30
    %v2085 = vmax.f32 %v2063, 1e-30
    %v2086 = vmax.f32 %v2065, 1e-30
    %v2087 = vmax.f32 %v2067, 1e-30
    %v2088 = vmax.f32 %v2069, 1e-30
    %v2089 = vmax.f32 %v2071, 1e-30
    %v2090 = vmax.f32 %v2073, 1e-30
    %v2091 = vmax.f32 %v2075, 1e-30
    %v2092 = vrcp.pop %v2076
    %v2093 = vrcp.pop %v2077
    %v2094 = vrcp.pop %v2078
    %v2095 = vrcp.pop %v2079
    %v2096 = vrcp.pop %v2080
    %v2097 = vrcp.pop %v2081
    %v2098 = vrcp.pop %v2082
    %v2099 = vrcp.pop %v2083
    %v2100 = vrcp.pop %v2084
    %v2101 = vrcp.pop %v2085
    %v2102 = vrcp.pop %v2086
    %v2103 = vrcp.pop %v2087
    %v2104 = vrcp.pop %v2088
    %v2105 = vrcp.pop %v2089
    %v2106 = vrcp.pop %v2090
    %v2107 = vrcp.pop %v2091
    %v2108 = vmul.f32 %v2013, %v2092
    %v2109 = vmul.f32 %v2015, %v2093
    %v2110 = vmul.f32 %v2017, %v2094
    %v2111 = vmul.f32 %v2019, %v2095
    %v2112 = vmul.f32 %v2021, %v2096
    %v2113 = vmul.f32 %v2023, %v2097
    %v2114 = vmul.f32 %v2025, %v2098
    %v2115 = vmul.f32 %v2027, %v2099
    %v2116 = vmul.f32 %v2029, %v2100
    %v2117 = vmul.f32 %v2031, %v2101
    %v2118 = vmul.f32 %v2033, %v2102
    %v2119 = vmul.f32 %v2035, %v2103
    %v2120 = vmul.f32 %v2037, %v2104
    %v2121 = vmul.f32 %v2039, %v2105
    %v2122 = vmul.f32 %v2041, %v2106
    %v2123 = vmul.f32 %v2043, %v2107
    %v2124 = vpack.c.bf16 %v2109, %v2108
    %v2125 = vpack.c.bf16 %v2111, %v2110
    %v2126 = vpack.c.bf16 %v2113, %v2112
    %v2127 = vpack.c.bf16 %v2115, %v2114
    %v2128 = vpack.c.bf16 %v2117, %v2116
    %v2129 = vpack.c.bf16 %v2119, %v2118
    %v2130 = vpack.c.bf16 %v2121, %v2120
    %v2131 = vpack.c.bf16 %v2123, %v2122
    %v2132 = vld [vmem:[%s10] sm:$0x1]
    %v2134 = vlaneseq
    %v2135 = vshrl.u32 %v2134, 7
    %v2136 = vsub.s32 0, %v2135
    %v2137 = vrot.slane %v2132, %v2136
    %2139 = vmatprep.subr.bf16.mxu0 0
    %2140 = vmatpush1.bf16.msra.mxu0 %v1767
    %2141 = vmatprep.subr.bf16.mxu0 0
    %2142 = vmatpush1.bf16.msra.mxu0 %v1768
    %2143 = vmatprep.subr.bf16.mxu0 0
    %2144 = vmatpush1.bf16.msra.mxu0 %v1769
    %2145 = vmatprep.subr.bf16.mxu0 0
    %2146 = vmatpush1.bf16.msra.mxu0 %v1770
    %2147 = vmatprep.subr.bf16.mxu0 0
    %2148 = vmatpush1.bf16.msra.mxu0 %v1771
    %2149 = vmatprep.subr.bf16.mxu0 0
    %2150 = vmatpush1.bf16.msra.mxu0 %v1772
    %2151 = vmatprep.subr.bf16.mxu0 0
    %2152 = vmatpush1.bf16.msra.mxu0 %v1773
    %2153 = vmatprep.subr.bf16.mxu0 0
    %2154 = vmatpush1.bf16.msra.mxu0 %v1774
    %2155 = vmatprep.subr.bf16.mxu0 0
    %2156 = vmatpush1.bf16.msra.mxu0 0
    %2157 = vmatprep.subr.bf16.mxu0 0
    %2158 = vmatpush1.bf16.msra.mxu0 0
    %2159 = vmatprep.subr.bf16.mxu0 0
    %2160 = vmatpush1.bf16.msra.mxu0 0
    %2161 = vmatprep.subr.bf16.mxu0 0
    %2162 = vmatpush1.bf16.msra.mxu0 0
    %2163 = vmatprep.subr.bf16.mxu0 0
    %2164 = vmatpush1.bf16.msra.mxu0 0
    %2165 = vmatprep.subr.bf16.mxu0 0
    %2166 = vmatpush1.bf16.msra.mxu0 0
    %2167 = vmatprep.subr.bf16.mxu0 0
    %2168 = vmatpush1.bf16.msra.mxu0 0
    %2169 = vmatprep.subr.bf16.mxu0 0
    %2170 = vmatpush1.bf16.msra.mxu0 0
    %2171 = vmatprep.mubr.bf16.mxu0 0
    %2172 = vmatmul.mubr.bf16.gmra.mrb[0].mxu0 %v2124
    %v2173 = vpop.f32.mrb[0].mxu0
    %v2174 = vadd.f32 %v2137, %v2173
    %v2175 = vpop.f32.mrb[0].mxu0
    %v2176 = vpop.f32.mrb[0].mxu0
    %v2177 = vadd.f32 %v2137, %v2176
    %v2178 = vpop.f32.mrb[0].mxu0
    %2179 = vmatprep.mubr.bf16.mxu0 0
    %2180 = vmatmul.mubr.bf16.gmra.mrb[0].mxu0 %v2125
    %v2181 = vpop.f32.mrb[0].mxu0
    %v2182 = vadd.f32 %v2137, %v2181
    %v2183 = vpop.f32.mrb[0].mxu0
    %v2184 = vpop.f32.mrb[0].mxu0
    %v2185 = vadd.f32 %v2137, %v2184
    %v2186 = vpop.f32.mrb[0].mxu0
    %2187 = vmatprep.mubr.bf16.mxu0 0
    %2188 = vmatmul.mubr.bf16.gmra.mrb[0].mxu0 %v2126
    %v2189 = vpop.f32.mrb[0].mxu0
    %v2190 = vadd.f32 %v2137, %v2189
    %v2191 = vpop.f32.mrb[0].mxu0
    %v2192 = vpop.f32.mrb[0].mxu0
    %v2193 = vadd.f32 %v2137, %v2192
    %v2194 = vpop.f32.mrb[0].mxu0
    %2195 = vmatprep.mubr.bf16.mxu0 0
    %2196 = vmatmul.mubr.bf16.gmra.mrb[0].mxu0 %v2127
    %v2197 = vpop.f32.mrb[0].mxu0
    %v2198 = vadd.f32 %v2137, %v2197
    %v2199 = vpop.f32.mrb[0].mxu0
    %v2200 = vpop.f32.mrb[0].mxu0
    %v2201 = vadd.f32 %v2137, %v2200
    %v2202 = vpop.f32.mrb[0].mxu0
    %2203 = vmatprep.mubr.bf16.mxu0 0
    %2204 = vmatmul.mubr.bf16.gmra.mrb[0].mxu0 %v2128
    %v2205 = vpop.f32.mrb[0].mxu0
    %v2206 = vadd.f32 %v2137, %v2205
    %v2207 = vpop.f32.mrb[0].mxu0
    %v2208 = vpop.f32.mrb[0].mxu0
    %v2209 = vadd.f32 %v2137, %v2208
    %v2210 = vpop.f32.mrb[0].mxu0
    %2211 = vmatprep.mubr.bf16.mxu0 0
    %2212 = vmatmul.mubr.bf16.gmra.mrb[0].mxu0 %v2129
    %v2213 = vpop.f32.mrb[0].mxu0
    %v2214 = vadd.f32 %v2137, %v2213
    %v2215 = vpop.f32.mrb[0].mxu0
    %v2216 = vpop.f32.mrb[0].mxu0
    %v2217 = vadd.f32 %v2137, %v2216
    %v2218 = vpop.f32.mrb[0].mxu0
    %2219 = vmatprep.mubr.bf16.mxu0 0
    %2220 = vmatmul.mubr.bf16.gmra.mrb[0].mxu0 %v2130
    %v2221 = vpop.f32.mrb[0].mxu0
    %v2222 = vadd.f32 %v2137, %v2221
    %v2223 = vpop.f32.mrb[0].mxu0
    %v2224 = vpop.f32.mrb[0].mxu0
    %v2225 = vadd.f32 %v2137, %v2224
    %v2226 = vpop.f32.mrb[0].mxu0
    %2227 = vmatprep.mubr.bf16.mxu0 0
    %2228 = vmatmul.mubr.bf16.gmra.mrb[0].mxu0 %v2131
    %v2229 = vpop.f32.mrb[0].mxu0
    %v2230 = vadd.f32 %v2137, %v2229
    %v2231 = vpop.f32.mrb[0].mxu0
    %v2232 = vpop.f32.mrb[0].mxu0
    %v2233 = vadd.f32 %v2137, %v2232
    %v2234 = vpop.f32.mrb[0].mxu0
    %2235 = vdwg.mxu0
    %2236 = vst [vmem:[#allocation11] sm:$0xff] %v2174
    %2237 = vst [vmem:[#allocation11 + $0x8] sm:$0xff] %v2177
    %2238 = vst [vmem:[#allocation11 + $0x10] sm:$0xff] %v2182
    %2239 = vst [vmem:[#allocation11 + $0x18] sm:$0xff] %v2185
    %2240 = vst [vmem:[#allocation11 + $0x20] sm:$0xff] %v2190
    %2241 = vst [vmem:[#allocation11 + $0x28] sm:$0xff] %v2193
    %2242 = vst [vmem:[#allocation11 + $0x30] sm:$0xff] %v2198
    %2243 = vst [vmem:[#allocation11 + $0x38] sm:$0xff] %v2201
    %2244 = vst [vmem:[#allocation11 + $0x40] sm:$0xff] %v2206
    %2245 = vst [vmem:[#allocation11 + $0x48] sm:$0xff] %v2209
    %2246 = vst [vmem:[#allocation11 + $0x50] sm:$0xff] %v2214
    %2247 = vst [vmem:[#allocation11 + $0x58] sm:$0xff] %v2217
    %2248 = vst [vmem:[#allocation11 + $0x60] sm:$0xff] %v2222
    %2249 = vst [vmem:[#allocation11 + $0x68] sm:$0xff] %v2225
    %2250 = vst [vmem:[#allocation11 + $0x70] sm:$0xff] %v2230
    %2251 = vst [vmem:[#allocation11 + $0x78] sm:$0xff] %v2233
    // Predicated region
    $region66: #{tpu_custom_call.1} parent=1 // pred_check
      _
    $region67: #{tpu_custom_call.1} parent=1 // pred_check_branch
      %2253 = sbr.rel (0) target = $region69
    $region68: #{tpu_custom_call.1} parent=1 // pred_region
      %s2255 = ssub.s32 2048, 2048
      %2256 = vsyncadd [#allocation4], %s2255
      %s2257 = sshll.u32 [#allocation11], 4
      %s2258 = int_to_ptr.vmem [resolvable:$true] %s2257
      %2263 = dma.vmem_to_hbm [thread:$0]  %s2258, 2048, %s11, [#allocation4], 128, 128, 8
    $region69: #{tpu_custom_call.1} parent=1 // pred_fallthru
      _
    // Predicated region
    $region70: #{tpu_custom_call.1} parent=1 // pred_check
      _
    $region71: #{tpu_custom_call.1} parent=1 // pred_check_branch
      %2265 = sbr.rel (0) target = $region73
    $region72: #{tpu_custom_call.1} parent=1 // pred_region
      %2266 = dma.done [#allocation4], 2048
    $region73: #{tpu_custom_call.1} parent=1 // pred_fallthru
      _
    %2267 = vsyncpa [#allocation3], 1
    %2268 = vsyncpa [#allocation6], 1
    %2269 = vsyncpa [#allocation9], 1
    %2270 = vsyncpa [#allocation4], 1

</llo_original>
